<compile_context>
chip_gen: v6e
topology: v6e:2x2x1
jax: 0.10.0
libtpu: 0.0.40
codegen_flags: <defaults>
</compile_context>

<pallas_src>
import jax
import jax.numpy as jnp
from jax.experimental import pallas as pl
from jax.experimental.pallas import tpu as pltpu

INPUT_SIZE = 100
HIDDEN1 = 300
HIDDEN2 = 200
OUTPUT_SIZE = 1

IN_PAD = 128    # 100 -> lane multiple
H1_PAD = 384    # 300 -> lane multiple
H2_PAD = 256    # 200 -> lane multiple

# (in, out) of every Linear layer: 7 mlp layers followed by the head.
LAYER_SIZES = [
    (INPUT_SIZE, HIDDEN1),
    (HIDDEN1, HIDDEN2),
    (HIDDEN2, HIDDEN1),
    (HIDDEN1, HIDDEN2),
    (HIDDEN2, HIDDEN1),
    (HIDDEN1, HIDDEN2),
    (HIDDEN2, HIDDEN1),
    (HIDDEN1, OUTPUT_SIZE),
]
NUM_LAYERS = len(LAYER_SIZES)


def _round_up(n, m):
    return ((n + m - 1) // m) * m


def _batch_tile_cap():
    # v5e MXU is 128x128 -> 128-row batch tiles; v6e/v7x MXU is 256x256 -> 256.
    try:
        kind = jax.devices()[0].device_kind.lower()
    except Exception:
        return 128
    return 128 if "v5" in kind else 256


_TILE_CAP = _batch_tile_cap()


def _probe_single_buffer():
    """True iff this Pallas/Mosaic build accepts pipeline_mode=pl.Buffered(1)."""
    if not hasattr(pl, "Buffered"):
        return False
    try:
        spec = pl.BlockSpec((8, 128), lambda i: (0, 0),
                            pipeline_mode=pl.Buffered(1))

        def _k(a_ref, o_ref):
            o_ref[...] = a_ref[...] + 1.0

        fn = pl.pallas_call(
            _k,
            out_shape=jax.ShapeDtypeStruct((16, 128), jnp.float32),
            grid=(2,),
            in_specs=[spec],
            out_specs=pl.BlockSpec((8, 128), lambda i: (i, 0)),
        )
        jax.jit(fn).lower(jnp.zeros((8, 128), jnp.float32)).compile()
        return True
    except Exception:
        return False


_SINGLE_BUFFER_OK = _probe_single_buffer()


def _resident_spec(shape):
    """Constant-index block (stays VMEM-resident across the whole grid);
    single-buffered when supported, halving its VMEM footprint."""
    index_map = lambda *_: (0,) * len(shape)
    if _SINGLE_BUFFER_OK:
        return pl.BlockSpec(shape, index_map, pipeline_mode=pl.Buffered(1))
    return pl.BlockSpec(shape, index_map)


def _siamese_mlp_kernel(x1_ref, x2_ref, w1_ref, wa_ref, wb_ref, wh_ref, b_ref,
                        out_ref):
    """forward_one on one (tile_b, 128) batch tile of branch pl.program_id(0)."""
    br = pl.program_id(0)
    # Select this branch's tile (both tiles are tiny; a VPU select is cheaper than
    # control flow and the input DMAs are issued by the pipeline either way).
    x = jnp.where(br == 0, x1_ref[...], x2_ref[...]).astype(jnp.bfloat16)
    bias = b_ref[...]                                      # (8, 384) f32

    # Layer 1: (tile_b, 128) @ (128, 384), bf16 MXU, f32 accumulate.
    y = jnp.dot(x, w1_ref[...], preferred_element_type=jnp.float32)
    h = jnp.maximum(y + bias[0:1, :H1_PAD], 0.0).astype(jnp.bfloat16)

    # Layers 2..7 alternate 384->256 / 256->384; same-shaped weights packed 3-deep.
    for l in range(3):
        y = jnp.dot(h, wa_ref[l], preferred_element_type=jnp.float32)      # 384 -> 256
        h = jnp.maximum(y + bias[2 * l + 1:2 * l + 2, :H2_PAD],
                        0.0).astype(jnp.bfloat16)
        y = jnp.dot(h, wb_ref[l], preferred_element_type=jnp.float32)      # 256 -> 384
        h = jnp.maximum(y + bias[2 * l + 2:2 * l + 3, :H1_PAD],
                        0.0).astype(jnp.bfloat16)

    # Head: (tile_b, 384) @ (384, 1) + b, sigmoid on the single real lane.
    z = jnp.dot(h, wh_ref[...], preferred_element_type=jnp.float32)
    z = z + bias[NUM_LAYERS - 1:NUM_LAYERS, :OUTPUT_SIZE]
    # sigmoid(x) = 0.5 * (tanh(x/2) + 1): stable, tanh goes to the EUP.
    out_ref[...] = 0.5 * (jnp.tanh(0.5 * z) + 1.0)


@jax.jit
def siamese_forward(x1, x2, params):
    """Equivalent of Siamese.forward(x1, x2) -> (out1, out2); one fused kernel."""
    w1, wa, wb, wh, b_packed = params
    b1, b2 = x1.shape[0], x2.shape[0]

    # Common per-branch batch tiling (sublane-aligned, capped at the MXU height).
    bp = max(_round_up(b1, 8), _round_up(b2, 8))
    tile_b = min(bp, _TILE_CAP)
    bp = _round_up(bp, tile_b)
    n_tiles = bp // tile_b

    # One tiny fused pad per branch (batch rows -> bp, feature lanes 100 -> 128).
    # Exact: w1 rows 100..127 are zero; padded batch rows are dropped at the end.
    x1p = jnp.pad(x1, ((0, bp - b1), (0, IN_PAD - INPUT_SIZE)))
    x2p = jnp.pad(x2, ((0, bp - b2), (0, IN_PAD - INPUT_SIZE)))

    param_elems = w1.size + wa.size + wb.size + wh.size
    cost = pl.CostEstimate(
        flops=2 * (2 * bp) * param_elems,
        transcendentals=2 * bp,
        bytes_accessed=(2 * param_elems                    # bf16 weights
                        + b_packed.size * 4                # packed f32 biases
                        + 2 * bp * IN_PAD * 4              # inputs
                        + 2 * bp * OUTPUT_SIZE * 4),       # width-1 output
    )

    x_spec = pl.BlockSpec((tile_b, IN_PAD), lambda br, i: (i, 0))

    out = pl.pallas_call(
        _siamese_mlp_kernel,
        out_shape=jax.ShapeDtypeStruct((2, bp, OUTPUT_SIZE), jnp.float32),
        grid=(2, n_tiles),            # (branch, batch tile): always >= 2 parallel tiles
        in_specs=[
            x_spec,                            # x1
            x_spec,                            # x2
            _resident_spec(w1.shape),          # (128, 384)    bf16
            _resident_spec(wa.shape),          # (3, 384, 256) bf16
            _resident_spec(wb.shape),          # (3, 256, 384) bf16
            _resident_spec(wh.shape),          # (384, 1)      bf16
            _resident_spec(b_packed.shape),    # (8, 384)      f32
        ],
        out_specs=pl.BlockSpec((None, tile_b, OUTPUT_SIZE),
                               lambda br, i: (br, i, 0)),
        compiler_params=pltpu.CompilerParams(
            dimension_semantics=("parallel", "parallel")),
        cost_estimate=cost,
    )(x1p, x2p, w1, wa, wb, wh, b_packed)

    return out[0, :b1], out[1, :b2]


def init_params(key):
    """Unpadded f32 parameters matching the PyTorch module (W stored as weight.T)."""
    raw = []
    keys = jax.random.split(key, 2 * NUM_LAYERS)
    for i, (fan_in, fan_out) in enumerate(LAYER_SIZES):
        bound = 1.0 / float(fan_in) ** 0.5
        w = jax.random.uniform(keys[2 * i], (fan_in, fan_out), jnp.float32, -bound, bound)
        b = jax.random.uniform(keys[2 * i + 1], (fan_out,), jnp.float32, -bound, bound)
        raw.append((w, b))
    return raw


def prepare_params(raw):
    """Lane-pad, cast weights to bf16, pack same-shaped layers and all biases.

    Padding is exact: padded weight rows/cols and bias lanes are zero, so padded
    activation lanes stay zero through every ReLU.
    """
    # Layer 1: pad input rows 100 -> 128 and output cols 300 -> 384.
    w1 = jnp.zeros((IN_PAD, H1_PAD), jnp.float32).at[:INPUT_SIZE, :HIDDEN1].set(raw[0][0])

    # Layers 2/4/6 (300 -> 200) and 3/5/7 (200 -> 300), packed 3-deep each.
    wa = jnp.zeros((3, H1_PAD, H2_PAD), jnp.float32)
    wb = jnp.zeros((3, H2_PAD, H1_PAD), jnp.float32)
    for l in range(3):
        wa = wa.at[l, :HIDDEN1, :HIDDEN2].set(raw[2 * l + 1][0])
        wb = wb.at[l, :HIDDEN2, :HIDDEN1].set(raw[2 * l + 2][0])

    # Head: pad only the input rows; single real output column.
    wh = jnp.zeros((H1_PAD, OUTPUT_SIZE), jnp.float32).at[:HIDDEN1, :].set(raw[-1][0])

    # All 8 biases in one (8, 384) f32 array (one DMA instead of eight).
    b_packed = jnp.zeros((NUM_LAYERS, H1_PAD), jnp.float32)
    for i, (_, fan_out) in enumerate(LAYER_SIZES):
        b_packed = b_packed.at[i, :fan_out].set(raw[i][1])

    return (w1.astype(jnp.bfloat16), wa.astype(jnp.bfloat16),
            wb.astype(jnp.bfloat16), wh.astype(jnp.bfloat16), b_packed)


def reference_forward_one(x, raw):
    """Pure-JAX f32 reference of Siamese.forward_one (unpadded params)."""
    h = x
    for w, b in raw[:-1]:
        h = jnp.maximum(h @ w + b, 0.0)
    w, b = raw[-1]
    return jax.nn.sigmoid(h @ w + b)


if __name__ == "__main__":
    key = jax.random.PRNGKey(0)
    pkey, x1key, x2key = jax.random.split(key, 3)

    raw_params = init_params(pkey)
    params = prepare_params(raw_params)

    batch = 8
    x1 = jax.random.normal(x1key, (batch, INPUT_SIZE), jnp.float32)
    x2 = jax.random.normal(x2key, (batch, INPUT_SIZE), jnp.float32)

    out1, out2 = siamese_forward(x1, x2, params)
    jax.block_until_ready((out1, out2))

    assert out1.shape == (batch, OUTPUT_SIZE)
    assert out2.shape == (batch, OUTPUT_SIZE)
    assert bool(jnp.all((out1 >= 0.0) & (out1 <= 1.0)))
    assert bool(jnp.all((out2 >= 0.0) & (out2 <= 1.0)))

    # Cross-check against the f32 pure-JAX reference (bf16 weights -> loose tol).
    ref1 = reference_forward_one(x1, raw_params)
    ref2 = reference_forward_one(x2, raw_params)
    assert bool(jnp.allclose(out1, ref1, atol=5e-2))
    assert bool(jnp.allclose(out2, ref2, atol=5e-2))

    print("KERNEL_OK")
</pallas_src>

<mosaic_0001>
module attributes {stable_mosaic.version = 11 : i64} {
  func.func @_siamese_mlp_kernel(%arg0: i32, %arg1: i32, %arg2: memref<8x128xf32, #tpu.memory_space<vmem>>, %arg3: memref<8x128xf32, #tpu.memory_space<vmem>>, %arg4: memref<128x384xbf16, #tpu.memory_space<vmem>>, %arg5: memref<3x384x256xbf16, #tpu.memory_space<vmem>>, %arg6: memref<3x256x384xbf16, #tpu.memory_space<vmem>>, %arg7: memref<384x1xbf16, #tpu.memory_space<vmem>>, %arg8: memref<8x384xf32, #tpu.memory_space<vmem>>, %arg9: memref<1x8x1xf32, #tpu.memory_space<vmem>>) attributes {dimension_semantics = [#tpu.dimension_semantics<parallel>, #tpu.dimension_semantics<parallel>], iteration_bounds = array<i64: 2, 1>, scalar_prefetch = 0 : i64, scratch_operands = 0 : i64, tpu.core_type = #tpu.core_type<tc>, window_params = [{transform_indices = @transform_0, window_bounds = array<i64: 8, 128>}, {transform_indices = @transform_1, window_bounds = array<i64: 8, 128>}, {pipeline_mode = #tpu.pipeline_mode<synchronous>, transform_indices = @transform_2, window_bounds = array<i64: 128, 384>}, {pipeline_mode = #tpu.pipeline_mode<synchronous>, transform_indices = @transform_3, window_bounds = array<i64: 3, 384, 256>}, {pipeline_mode = #tpu.pipeline_mode<synchronous>, transform_indices = @transform_4, window_bounds = array<i64: 3, 256, 384>}, {pipeline_mode = #tpu.pipeline_mode<synchronous>, transform_indices = @transform_5, window_bounds = array<i64: 384, 1>}, {pipeline_mode = #tpu.pipeline_mode<synchronous>, transform_indices = @transform_6, window_bounds = array<i64: 8, 384>}, {transform_indices = @transform_7, window_bounds = array<i64: 1, 8, 1>}]} {
    %c0_i32 = arith.constant 0 : i32
    %0 = arith.cmpi eq, %arg0, %c0_i32 : i32
    %c0 = arith.constant 0 : index
    %c0_0 = arith.constant 0 : index
    %1 = vector.load %arg2[%c0, %c0_0] : memref<8x128xf32, #tpu.memory_space<vmem>>, vector<8x128xf32>
    %c0_1 = arith.constant 0 : index
    %c0_2 = arith.constant 0 : index
    %2 = vector.load %arg3[%c0_1, %c0_2] : memref<8x128xf32, #tpu.memory_space<vmem>>, vector<8x128xf32>
    %3 = arith.select %0, %1, %2 : vector<8x128xf32>
    %4 = arith.truncf %3 : vector<8x128xf32> to vector<8x128xbf16>
    %c0_3 = arith.constant 0 : index
    %c0_4 = arith.constant 0 : index
    %5 = vector.load %arg8[%c0_3, %c0_4] : memref<8x384xf32, #tpu.memory_space<vmem>>, vector<8x384xf32>
    %c0_5 = arith.constant 0 : index
    %c0_6 = arith.constant 0 : index
    %6 = vector.load %arg4[%c0_5, %c0_6] : memref<128x384xbf16, #tpu.memory_space<vmem>>, vector<128x384xbf16>
    %cst = arith.constant dense<0.000000e+00> : vector<8x384xf32>
    %7 = tpu.matmul %4, %6, %cst {dimension_numbers = #tpu.dot_dimension_numbers<[1], [0], [0], [1], [0, 0, 1, 1], [], []>} : vector<8x128xbf16>, vector<128x384xbf16>, vector<8x384xf32> -> vector<8x384xf32>
    %8 = vector.extract_strided_slice %5 {offsets = [0, 0], sizes = [1, 384], strides = [1, 1]} : vector<8x384xf32> to vector<1x384xf32>
    %9 = vector.broadcast %8 : vector<1x384xf32> to vector<8x384xf32>
    %10 = arith.addf %7, %9 : vector<8x384xf32>
    %cst_7 = arith.constant 0.000000e+00 : f32
    %11 = vector.broadcast %cst_7 : f32 to vector<8x384xf32>
    %12 = arith.maximumf %10, %11 : vector<8x384xf32>
    %13 = arith.truncf %12 : vector<8x384xf32> to vector<8x384xbf16>
    %c0_8 = arith.constant 0 : index
    %c0_9 = arith.constant 0 : index
    %c0_10 = arith.constant 0 : index
    %14 = vector.load %arg5[%c0_8, %c0_9, %c0_10] : memref<3x384x256xbf16, #tpu.memory_space<vmem>>, vector<1x384x256xbf16>
    %15 = vector.shape_cast %14 : vector<1x384x256xbf16> to vector<384x256xbf16>
    %cst_11 = arith.constant dense<0.000000e+00> : vector<8x256xf32>
    %16 = tpu.matmul %13, %15, %cst_11 {dimension_numbers = #tpu.dot_dimension_numbers<[1], [0], [0], [1], [0, 0, 1, 1], [], []>} : vector<8x384xbf16>, vector<384x256xbf16>, vector<8x256xf32> -> vector<8x256xf32>
    %17 = vector.extract_strided_slice %5 {offsets = [1, 0], sizes = [1, 256], strides = [1, 1]} : vector<8x384xf32> to vector<1x256xf32>
    %18 = vector.broadcast %17 : vector<1x256xf32> to vector<8x256xf32>
    %19 = arith.addf %16, %18 : vector<8x256xf32>
    %cst_12 = arith.constant 0.000000e+00 : f32
    %20 = vector.broadcast %cst_12 : f32 to vector<8x256xf32>
    %21 = arith.maximumf %19, %20 : vector<8x256xf32>
    %22 = arith.truncf %21 : vector<8x256xf32> to vector<8x256xbf16>
    %c0_13 = arith.constant 0 : index
    %c0_14 = arith.constant 0 : index
    %c0_15 = arith.constant 0 : index
    %23 = vector.load %arg6[%c0_13, %c0_14, %c0_15] : memref<3x256x384xbf16, #tpu.memory_space<vmem>>, vector<1x256x384xbf16>
    %24 = vector.shape_cast %23 : vector<1x256x384xbf16> to vector<256x384xbf16>
    %cst_16 = arith.constant dense<0.000000e+00> : vector<8x384xf32>
    %25 = tpu.matmul %22, %24, %cst_16 {dimension_numbers = #tpu.dot_dimension_numbers<[1], [0], [0], [1], [0, 0, 1, 1], [], []>} : vector<8x256xbf16>, vector<256x384xbf16>, vector<8x384xf32> -> vector<8x384xf32>
    %26 = vector.extract_strided_slice %5 {offsets = [2, 0], sizes = [1, 384], strides = [1, 1]} : vector<8x384xf32> to vector<1x384xf32>
    %27 = vector.broadcast %26 : vector<1x384xf32> to vector<8x384xf32>
    %28 = arith.addf %25, %27 : vector<8x384xf32>
    %cst_17 = arith.constant 0.000000e+00 : f32
    %29 = vector.broadcast %cst_17 : f32 to vector<8x384xf32>
    %30 = arith.maximumf %28, %29 : vector<8x384xf32>
    %31 = arith.truncf %30 : vector<8x384xf32> to vector<8x384xbf16>
    %c1 = arith.constant 1 : index
    %c0_18 = arith.constant 0 : index
    %c0_19 = arith.constant 0 : index
    %32 = vector.load %arg5[%c1, %c0_18, %c0_19] : memref<3x384x256xbf16, #tpu.memory_space<vmem>>, vector<1x384x256xbf16>
    %33 = vector.shape_cast %32 : vector<1x384x256xbf16> to vector<384x256xbf16>
    %cst_20 = arith.constant dense<0.000000e+00> : vector<8x256xf32>
    %34 = tpu.matmul %31, %33, %cst_20 {dimension_numbers = #tpu.dot_dimension_numbers<[1], [0], [0], [1], [0, 0, 1, 1], [], []>} : vector<8x384xbf16>, vector<384x256xbf16>, vector<8x256xf32> -> vector<8x256xf32>
    %35 = vector.extract_strided_slice %5 {offsets = [3, 0], sizes = [1, 256], strides = [1, 1]} : vector<8x384xf32> to vector<1x256xf32>
    %36 = vector.broadcast %35 : vector<1x256xf32> to vector<8x256xf32>
    %37 = arith.addf %34, %36 : vector<8x256xf32>
    %cst_21 = arith.constant 0.000000e+00 : f32
    %38 = vector.broadcast %cst_21 : f32 to vector<8x256xf32>
    %39 = arith.maximumf %37, %38 : vector<8x256xf32>
    %40 = arith.truncf %39 : vector<8x256xf32> to vector<8x256xbf16>
    %c1_22 = arith.constant 1 : index
    %c0_23 = arith.constant 0 : index
    %c0_24 = arith.constant 0 : index
    %41 = vector.load %arg6[%c1_22, %c0_23, %c0_24] : memref<3x256x384xbf16, #tpu.memory_space<vmem>>, vector<1x256x384xbf16>
    %42 = vector.shape_cast %41 : vector<1x256x384xbf16> to vector<256x384xbf16>
    %cst_25 = arith.constant dense<0.000000e+00> : vector<8x384xf32>
    %43 = tpu.matmul %40, %42, %cst_25 {dimension_numbers = #tpu.dot_dimension_numbers<[1], [0], [0], [1], [0, 0, 1, 1], [], []>} : vector<8x256xbf16>, vector<256x384xbf16>, vector<8x384xf32> -> vector<8x384xf32>
    %44 = vector.extract_strided_slice %5 {offsets = [4, 0], sizes = [1, 384], strides = [1, 1]} : vector<8x384xf32> to vector<1x384xf32>
    %45 = vector.broadcast %44 : vector<1x384xf32> to vector<8x384xf32>
    %46 = arith.addf %43, %45 : vector<8x384xf32>
    %cst_26 = arith.constant 0.000000e+00 : f32
    %47 = vector.broadcast %cst_26 : f32 to vector<8x384xf32>
    %48 = arith.maximumf %46, %47 : vector<8x384xf32>
    %49 = arith.truncf %48 : vector<8x384xf32> to vector<8x384xbf16>
    %c2 = arith.constant 2 : index
    %c0_27 = arith.constant 0 : index
    %c0_28 = arith.constant 0 : index
    %50 = vector.load %arg5[%c2, %c0_27, %c0_28] : memref<3x384x256xbf16, #tpu.memory_space<vmem>>, vector<1x384x256xbf16>
    %51 = vector.shape_cast %50 : vector<1x384x256xbf16> to vector<384x256xbf16>
    %cst_29 = arith.constant dense<0.000000e+00> : vector<8x256xf32>
    %52 = tpu.matmul %49, %51, %cst_29 {dimension_numbers = #tpu.dot_dimension_numbers<[1], [0], [0], [1], [0, 0, 1, 1], [], []>} : vector<8x384xbf16>, vector<384x256xbf16>, vector<8x256xf32> -> vector<8x256xf32>
    %53 = vector.extract_strided_slice %5 {offsets = [5, 0], sizes = [1, 256], strides = [1, 1]} : vector<8x384xf32> to vector<1x256xf32>
    %54 = vector.broadcast %53 : vector<1x256xf32> to vector<8x256xf32>
    %55 = arith.addf %52, %54 : vector<8x256xf32>
    %cst_30 = arith.constant 0.000000e+00 : f32
    %56 = vector.broadcast %cst_30 : f32 to vector<8x256xf32>
    %57 = arith.maximumf %55, %56 : vector<8x256xf32>
    %58 = arith.truncf %57 : vector<8x256xf32> to vector<8x256xbf16>
    %c2_31 = arith.constant 2 : index
    %c0_32 = arith.constant 0 : index
    %c0_33 = arith.constant 0 : index
    %59 = vector.load %arg6[%c2_31, %c0_32, %c0_33] : memref<3x256x384xbf16, #tpu.memory_space<vmem>>, vector<1x256x384xbf16>
    %60 = vector.shape_cast %59 : vector<1x256x384xbf16> to vector<256x384xbf16>
    %cst_34 = arith.constant dense<0.000000e+00> : vector<8x384xf32>
    %61 = tpu.matmul %58, %60, %cst_34 {dimension_numbers = #tpu.dot_dimension_numbers<[1], [0], [0], [1], [0, 0, 1, 1], [], []>} : vector<8x256xbf16>, vector<256x384xbf16>, vector<8x384xf32> -> vector<8x384xf32>
    %62 = vector.extract_strided_slice %5 {offsets = [6, 0], sizes = [1, 384], strides = [1, 1]} : vector<8x384xf32> to vector<1x384xf32>
    %63 = vector.broadcast %62 : vector<1x384xf32> to vector<8x384xf32>
    %64 = arith.addf %61, %63 : vector<8x384xf32>
    %cst_35 = arith.constant 0.000000e+00 : f32
    %65 = vector.broadcast %cst_35 : f32 to vector<8x384xf32>
    %66 = arith.maximumf %64, %65 : vector<8x384xf32>
    %67 = arith.truncf %66 : vector<8x384xf32> to vector<8x384xbf16>
    %c0_36 = arith.constant 0 : index
    %c0_37 = arith.constant 0 : index
    %68 = vector.load %arg7[%c0_36, %c0_37] : memref<384x1xbf16, #tpu.memory_space<vmem>>, vector<384x1xbf16>
    %cst_38 = arith.constant dense<0.000000e+00> : vector<8x1xf32>
    %69 = tpu.matmul %67, %68, %cst_38 {dimension_numbers = #tpu.dot_dimension_numbers<[1], [0], [0], [1], [0, 0, 1, 1], [], []>} : vector<8x384xbf16>, vector<384x1xbf16>, vector<8x1xf32> -> vector<8x1xf32>
    %70 = vector.extract_strided_slice %5 {offsets = [7, 0], sizes = [1, 1], strides = [1, 1]} : vector<8x384xf32> to vector<1x1xf32>
    %71 = vector.broadcast %70 : vector<1x1xf32> to vector<8x1xf32>
    %72 = arith.addf %69, %71 : vector<8x1xf32>
    %cst_39 = arith.constant 5.000000e-01 : f32
    %73 = vector.broadcast %cst_39 : f32 to vector<8x1xf32>
    %74 = arith.mulf %73, %72 : vector<8x1xf32>
    %75 = math.tanh %74 : vector<8x1xf32>
    %cst_40 = arith.constant 1.000000e+00 : f32
    %76 = vector.broadcast %cst_40 : f32 to vector<8x1xf32>
    %77 = arith.addf %75, %76 : vector<8x1xf32>
    %cst_41 = arith.constant 5.000000e-01 : f32
    %78 = vector.broadcast %cst_41 : f32 to vector<8x1xf32>
    %79 = arith.mulf %78, %77 : vector<8x1xf32>
    %c0_42 = arith.constant 0 : index
    %c0_43 = arith.constant 0 : index
    %c0_44 = arith.constant 0 : index
    %80 = vector.load %arg9[%c0_42, %c0_43, %c0_44] : memref<1x8x1xf32, #tpu.memory_space<vmem>>, vector<1x8x1xf32>
    %81 = vector.shape_cast %80 : vector<1x8x1xf32> to vector<8x1xf32>
    %82 = vector.shape_cast %79 : vector<8x1xf32> to vector<1x8x1xf32>
    tpu.vector_store %arg9[%c0_42, %c0_43, %c0_44], %82 {strides = array<i32>} : memref<1x8x1xf32, #tpu.memory_space<vmem>>, vector<1x8x1xf32>,
    return
  }
  func.func @transform_0(%arg0: i32, %arg1: i32) -> (i32, i32) {
    %c0_i32 = arith.constant 0 : i32
    %c0_i32_0 = arith.constant 0 : i32
    return %arg1, %c0_i32 : i32, i32
  }
  func.func @transform_1(%arg0: i32, %arg1: i32) -> (i32, i32) {
    %c0_i32 = arith.constant 0 : i32
    %c0_i32_0 = arith.constant 0 : i32
    return %arg1, %c0_i32 : i32, i32
  }
  func.func @transform_2(%arg0: i32, %arg1: i32) -> (i32, i32) {
    %c0_i32 = arith.constant 0 : i32
    %c0_i32_0 = arith.constant 0 : i32
    %c0_i32_1 = arith.constant 0 : i32
    return %c0_i32, %c0_i32_0 : i32, i32
  }
  func.func @transform_3(%arg0: i32, %arg1: i32) -> (i32, i32, i32) {
    %c0_i32 = arith.constant 0 : i32
    %c0_i32_0 = arith.constant 0 : i32
    %c0_i32_1 = arith.constant 0 : i32
    %c0_i32_2 = arith.constant 0 : i32
    return %c0_i32, %c0_i32_0, %c0_i32_1 : i32, i32, i32
  }
  func.func @transform_4(%arg0: i32, %arg1: i32) -> (i32, i32, i32) {
    %c0_i32 = arith.constant 0 : i32
    %c0_i32_0 = arith.constant 0 : i32
    %c0_i32_1 = arith.constant 0 : i32
    %c0_i32_2 = arith.constant 0 : i32
    return %c0_i32, %c0_i32_0, %c0_i32_1 : i32, i32, i32
  }
  func.func @transform_5(%arg0: i32, %arg1: i32) -> (i32, i32) {
    %c0_i32 = arith.constant 0 : i32
    %c0_i32_0 = arith.constant 0 : i32
    %c0_i32_1 = arith.constant 0 : i32
    return %c0_i32, %c0_i32_0 : i32, i32
  }
  func.func @transform_6(%arg0: i32, %arg1: i32) -> (i32, i32) {
    %c0_i32 = arith.constant 0 : i32
    %c0_i32_0 = arith.constant 0 : i32
    %c0_i32_1 = arith.constant 0 : i32
    return %c0_i32, %c0_i32_0 : i32, i32
  }
  func.func @transform_7(%arg0: i32, %arg1: i32) -> (i32, i32, i32) {
    %c0_i32 = arith.constant 0 : i32
    %c0_i32_0 = arith.constant 0 : i32
    return %arg0, %arg1, %c0_i32 : i32, i32, i32
  }
}

</mosaic_0001>

<llo_original>
// kernel: siamese_forward.1
$region0: #{siamese_forward.1}
  #allocation0 [shape = 'u32[]', space=smem, size = 0x4, offset = 0x4, fixed_abs, tag = 'smem constant byte address 0x4 - core index']
  #allocation1 [shape = 'u32[144,128]{1,0:T(1,128)}', space=vmem, size = 0x12000, scoped, tag = 'internal scratch']
  %s0 = inlined_call_operand.vmem [shape: f32[8,128], index: 0, kind: input, shape index: {}]
  %s1 = inlined_call_operand.vmem [shape: f32[8,128], index: 1, kind: input, shape index: {}]
  %s2 = inlined_call_operand.vmem [shape: bf16[128,384], index: 2, kind: input, shape index: {}]
  %s3 = inlined_call_operand.hbm [shape: bf16[3,384,256], index: 3, kind: input, shape index: {}]
  %s4 = inlined_call_operand.hbm [shape: bf16[3,256,384], index: 4, kind: input, shape index: {}]
  %s5 = inlined_call_operand.vmem [shape: bf16[384,1], index: 5, kind: input, shape index: {}]
  %s6 = inlined_call_operand.vmem [shape: f32[8,384], index: 6, kind: input, shape index: {}]
  %s7 = inlined_call_operand.vmem [shape: f32[2,8,1], index: 7, kind: output, shape index: {}]
  %s8 = sld [smem:[#allocation0]]
  $region69: #{siamese_forward.1} parent=0
    _
  %s10 = ssub.s32 1, %s8
  %s11 = scalar_select 0, %s10, %s8
  $region1: #{siamese_forward.1} parent=0
    #allocation2 [shape = 'u8[589824]{0}', space=vmem, size = 0x90000, scoped, tag = 'input window, operand 3, single buffered']
    #allocation3 [shape = 's32[2]{0}', space=sflag, size = 0x8, scoped, tag = 'scoped memory for siamese_forward.1']
    #allocation4 [shape = 'u8[589824]{0}', space=vmem, size = 0x90000, scoped, tag = 'input window, operand 4, single buffered']
    #allocation5 [shape = 's32[1]{0}', space=sflag, size = 0x4, scoped, tag = 'scoped memory for siamese_forward.1']
    %12 = vsyncpa [#allocation3], 0
    %13 = vsyncpa [#allocation5], 0
    loop: start=0, step=1, limit=4
    $region2: #{siamese_forward.1} parent=1 // loop_pre_header
      _
    $region3: #{siamese_forward.1} parent=1 // loop_header
      %s15 = sphi 0, %s19
      %p16 = scmp.ge.s32.totalorder %s15, 4
      %s22 = sphi 0, %s34
      %s23 = sphi 0, %s30
      %s24 = sphi 0, %s22
      %s25 = sphi 0, %s23
      %s26 = sphi 0, %s24
      %s27 = sphi 0, %s25
      %s37 = sphi 0, %s39
      %s40 = sphi 0, %s37
      %s41 = sphi 0, %s40
      %s57 = sphi 0, %s41
      %s63 = sphi 0, %s65
      %s66 = sphi 0, %s63
      %s67 = sphi 0, %s66
      %s83 = sphi 0, %s67
      %s87 = sphi 0, %s87
      %s89 = sphi 0, %s87
      %s90 = sphi 0, %s89
      %s104 = sphi 0, %s90
      %s108 = sphi 0, %s108
      %s110 = sphi 0, %s108
      %s111 = sphi 0, %s110
      %s125 = sphi 0, %s111
      %s129 = sphi 0, %s129
      %s131 = sphi 0, %s129
      %s132 = sphi 0, %s131
      %s146 = sphi 0, %s132
      %s150 = sphi 0, %s150
      %s152 = sphi 0, %s150
      %s153 = sphi 0, %s152
      %s167 = sphi 0, %s153
      %s171 = sphi 0, %s171
      %s173 = sphi 0, %s171
      %s174 = sphi 0, %s173
      %s188 = sphi 0, %s174
      %s196 = sphi 0, %s198
      %s199 = sphi 0, %s196
      %s200 = sphi 0, %s199
      %s216 = sphi 0, %s200
    $region4: #{siamese_forward.1} parent=1 // loop_header_branch
      %18 = sbr.rel (%p16) target = $region8
    $region5: #{siamese_forward.1} parent=1 // loop_body
      %s20 = ssub.s32 %s15, 1
      %s21 = ssub.s32 %s15, 2
      %s28 = sadd.s32 1, %s23
      %p29 = scmp.ge.s32.totalorder %s28, 1
      %s30 = scalar_select %p29, 0, %s28
      %s31 = sadd.s32 1, %s22
      %s32 = scalar_select %p29, %s31, %s22
      %p33 = scmp.ge.s32.totalorder %s32, 2
      %s34 = scalar_select %p33, 0, %s32
      %s35 = ssub.s32 %s23, %s30
      %p36 = scmp.eq.s32.totalorder %s35, 0
      %s38 = sadd.s32 %s37, 1
      %s39 = scalar_select %p36, %s37, %s38
      %p42 = pneg %p36
      %p43 = scmp.eq.s32.totalorder %s15, 1
      %p44 = por %p42, %p43
      %p45 = scmp.ne.s32.totalorder %s37, %s40
      %p46 = scmp.eq.s32.totalorder %s15, 0
      %p47 = por %p45, %p46
      %p48 = scmp.ne.s32.totalorder %s37, %s40
      %p49 = scmp.eq.s32.totalorder %s20, 1
      %p50 = por %p48, %p49
      %p51 = scmp.ne.s32.totalorder %s40, %s41
      %p52 = scmp.eq.s32.totalorder %s20, 0
      %p53 = por %p51, %p52
      %p54 = scmp.ne.s32.totalorder %s40, %s41
      %p55 = scmp.eq.s32.totalorder %s21, 1
      %p56 = por %p54, %p55
      %p58 = scmp.ne.s32.totalorder %s41, %s57
      %p59 = scmp.eq.s32.totalorder %s21, 0
      %p60 = por %p58, %p59
      %s61 = ssub.s32 %s23, %s30
      %p62 = scmp.eq.s32.totalorder %s61, 0
      %s64 = sadd.s32 %s63, 1
      %s65 = scalar_select %p62, %s63, %s64
      %p68 = pneg %p62
      %p69 = scmp.eq.s32.totalorder %s15, 1
      %p70 = por %p68, %p69
      %p71 = scmp.ne.s32.totalorder %s63, %s66
      %p72 = scmp.eq.s32.totalorder %s15, 0
      %p73 = por %p71, %p72
      %p74 = scmp.ne.s32.totalorder %s63, %s66
      %p75 = scmp.eq.s32.totalorder %s20, 1
      %p76 = por %p74, %p75
      %p77 = scmp.ne.s32.totalorder %s66, %s67
      %p78 = scmp.eq.s32.totalorder %s20, 0
      %p79 = por %p77, %p78
      %p80 = scmp.ne.s32.totalorder %s66, %s67
      %p81 = scmp.eq.s32.totalorder %s21, 1
      %p82 = por %p80, %p81
      %p84 = scmp.ne.s32.totalorder %s67, %s83
      %p85 = scmp.eq.s32.totalorder %s21, 0
      %p86 = por %p84, %p85
      %s88 = sadd.s32 %s87, 1
      %p91 = scmp.eq.s32.totalorder %s15, 1
      %p92 = scmp.ne.s32.totalorder %s87, %s89
      %p93 = scmp.eq.s32.totalorder %s15, 0
      %p94 = por %p92, %p93
      %p95 = scmp.ne.s32.totalorder %s87, %s89
      %p96 = scmp.eq.s32.totalorder %s20, 1
      %p97 = por %p95, %p96
      %p98 = scmp.ne.s32.totalorder %s89, %s90
      %p99 = scmp.eq.s32.totalorder %s20, 0
      %p100 = por %p98, %p99
      %p101 = scmp.ne.s32.totalorder %s89, %s90
      %p102 = scmp.eq.s32.totalorder %s21, 1
      %p103 = por %p101, %p102
      %p105 = scmp.ne.s32.totalorder %s90, %s104
      %p106 = scmp.eq.s32.totalorder %s21, 0
      %p107 = por %p105, %p106
      %s109 = sadd.s32 %s108, 1
      %p112 = scmp.eq.s32.totalorder %s15, 1
      %p113 = scmp.ne.s32.totalorder %s108, %s110
      %p114 = scmp.eq.s32.totalorder %s15, 0
      %p115 = por %p113, %p114
      %p116 = scmp.ne.s32.totalorder %s108, %s110
      %p117 = scmp.eq.s32.totalorder %s20, 1
      %p118 = por %p116, %p117
      %p119 = scmp.ne.s32.totalorder %s110, %s111
      %p120 = scmp.eq.s32.totalorder %s20, 0
      %p121 = por %p119, %p120
      %p122 = scmp.ne.s32.totalorder %s110, %s111
      %p123 = scmp.eq.s32.totalorder %s21, 1
      %p124 = por %p122, %p123
      %p126 = scmp.ne.s32.totalorder %s111, %s125
      %p127 = scmp.eq.s32.totalorder %s21, 0
      %p128 = por %p126, %p127
      %s130 = sadd.s32 %s129, 1
      %p133 = scmp.eq.s32.totalorder %s15, 1
      %p134 = scmp.ne.s32.totalorder %s129, %s131
      %p135 = scmp.eq.s32.totalorder %s15, 0
      %p136 = por %p134, %p135
      %p137 = scmp.ne.s32.totalorder %s129, %s131
      %p138 = scmp.eq.s32.totalorder %s20, 1
      %p139 = por %p137, %p138
      %p140 = scmp.ne.s32.totalorder %s131, %s132
      %p141 = scmp.eq.s32.totalorder %s20, 0
      %p142 = por %p140, %p141
      %p143 = scmp.ne.s32.totalorder %s131, %s132
      %p144 = scmp.eq.s32.totalorder %s21, 1
      %p145 = por %p143, %p144
      %p147 = scmp.ne.s32.totalorder %s132, %s146
      %p148 = scmp.eq.s32.totalorder %s21, 0
      %p149 = por %p147, %p148
      %s151 = sadd.s32 %s150, 1
      %p154 = scmp.eq.s32.totalorder %s15, 1
      %p155 = scmp.ne.s32.totalorder %s150, %s152
      %p156 = scmp.eq.s32.totalorder %s15, 0
      %p157 = por %p155, %p156
      %p158 = scmp.ne.s32.totalorder %s150, %s152
      %p159 = scmp.eq.s32.totalorder %s20, 1
      %p160 = por %p158, %p159
      %p161 = scmp.ne.s32.totalorder %s152, %s153
      %p162 = scmp.eq.s32.totalorder %s20, 0
      %p163 = por %p161, %p162
      %p164 = scmp.ne.s32.totalorder %s152, %s153
      %p165 = scmp.eq.s32.totalorder %s21, 1
      %p166 = por %p164, %p165
      %p168 = scmp.ne.s32.totalorder %s153, %s167
      %p169 = scmp.eq.s32.totalorder %s21, 0
      %p170 = por %p168, %p169
      %s172 = sadd.s32 %s171, 1
      %p175 = scmp.eq.s32.totalorder %s15, 1
      %p176 = scmp.ne.s32.totalorder %s171, %s173
      %p177 = scmp.eq.s32.totalorder %s15, 0
      %p178 = por %p176, %p177
      %p179 = scmp.ne.s32.totalorder %s171, %s173
      %p180 = scmp.eq.s32.totalorder %s20, 1
      %p181 = por %p179, %p180
      %p182 = scmp.ne.s32.totalorder %s173, %s174
      %p183 = scmp.eq.s32.totalorder %s20, 0
      %p184 = por %p182, %p183
      %p185 = scmp.ne.s32.totalorder %s173, %s174
      %p186 = scmp.eq.s32.totalorder %s21, 1
      %p187 = por %p185, %p186
      %p189 = scmp.ne.s32.totalorder %s174, %s188
      %p190 = scmp.eq.s32.totalorder %s21, 0
      %p191 = por %p189, %p190
      %s192 = ssub.s32 %s22, %s34
      %s193 = ssub.s32 %s23, %s30
      %s194 = sor.u32 %s192, %s193
      %p195 = scmp.eq.s32.totalorder %s194, 0
      %s197 = sadd.s32 %s196, 1
      %s198 = scalar_select %p195, %s196, %s197
      %p201 = pneg %p195
      %p202 = scmp.eq.s32.totalorder %s15, 1
      %p203 = por %p201, %p202
      %p204 = scmp.ne.s32.totalorder %s196, %s199
      %p205 = scmp.eq.s32.totalorder %s15, 0
      %p206 = por %p204, %p205
      %p207 = scmp.ne.s32.totalorder %s196, %s199
      %p208 = scmp.eq.s32.totalorder %s20, 1
      %p209 = por %p207, %p208
      %p210 = scmp.ne.s32.totalorder %s199, %s200
      %p211 = scmp.eq.s32.totalorder %s20, 0
      %p212 = por %p210, %p211
      %p213 = scmp.ne.s32.totalorder %s199, %s200
      %p214 = scmp.eq.s32.totalorder %s21, 1
      %p215 = por %p213, %p214
      %p217 = scmp.ne.s32.totalorder %s200, %s216
      %p218 = scmp.eq.s32.totalorder %s21, 0
      %p219 = por %p217, %p218
      %p220 = scmp.le.s32.totalorder 1, %s15
      %p221 = scmp.lt.s32.totalorder %s15, 3
      %p222 = pnand %p220, %p221
      %p223 = pneg %p222
      // Predicated region
      $region9: #{siamese_forward.1} parent=5 // pred_check
        _
      $region10: #{siamese_forward.1} parent=5 // pred_check_branch
        %225 = sbr.rel (%p222) target = $region12
      $region11: #{siamese_forward.1} parent=5 // pred_region
        %s226 = ssub.s32 %s15, 1
        // Predicated region
        $region13: #{siamese_forward.1} parent=11 // pred_check
          %p227 = pneg %p53
        $region14: #{siamese_forward.1} parent=11 // pred_check_branch
          %229 = sbr.rel (%p227) target = $region16
        $region15: #{siamese_forward.1} parent=11 // pred_region
          %p230 = scmp.lt.s32.totalorder %s25, 0
          %s231 = scalar_select %p230, %s25, 0
          %s232 = smul.addr %s231, 8
          %s233 = scalar_lea.vmem %s0, %s232
        $region16: #{siamese_forward.1} parent=11 // pred_fallthru
          _
        // Predicated region
        $region17: #{siamese_forward.1} parent=11 // pred_check
          %p234 = pneg %p79
        $region18: #{siamese_forward.1} parent=11 // pred_check_branch
          %236 = sbr.rel (%p234) target = $region20
        $region19: #{siamese_forward.1} parent=11 // pred_region
          %p237 = scmp.lt.s32.totalorder %s25, 0
          %s238 = scalar_select %p237, %s25, 0
          %s239 = smul.addr %s238, 8
          %s240 = scalar_lea.vmem %s1, %s239
        $region20: #{siamese_forward.1} parent=11 // pred_fallthru
          _
        // Predicated region
        $region21: #{siamese_forward.1} parent=11 // pred_check
          %p241 = pneg %p100
        $region22: #{siamese_forward.1} parent=11 // pred_check_branch
          %243 = sbr.rel (%p241) target = $region24
        $region23: #{siamese_forward.1} parent=11 // pred_region
          _
        $region24: #{siamese_forward.1} parent=11 // pred_fallthru
          _
        // Predicated region
        $region25: #{siamese_forward.1} parent=11 // pred_check
          %p244 = pneg %p121
        $region26: #{siamese_forward.1} parent=11 // pred_check_branch
          %246 = sbr.rel (%p244) target = $region28
        $region27: #{siamese_forward.1} parent=11 // pred_region
          %s248 = ssub.s32 18432, 18432
          %249 = vsyncadd [#allocation3], %s248
          %s250 = sshll.u32 [#allocation2], 4
          %s251 = int_to_ptr.vmem [resolvable:$true] %s250
          %256 = dma.hbm_to_vmem [thread:$0]  %s3, 18432, %s251, [#allocation3], 128, 128, 8
        $region28: #{siamese_forward.1} parent=11 // pred_fallthru
          _
        // Predicated region
        $region29: #{siamese_forward.1} parent=11 // pred_check
          %p257 = pneg %p142
        $region30: #{siamese_forward.1} parent=11 // pred_check_branch
          %259 = sbr.rel (%p257) target = $region32
        $region31: #{siamese_forward.1} parent=11 // pred_region
          %s261 = ssub.s32 18432, 18432
          %262 = vsyncadd [#allocation5], %s261
          %s263 = sshll.u32 [#allocation4], 4
          %s264 = int_to_ptr.vmem [resolvable:$true] %s263
          %269 = dma.hbm_to_vmem [thread:$0]  %s4, 18432, %s264, [#allocation5], 192, 192, 12
        $region32: #{siamese_forward.1} parent=11 // pred_fallthru
          _
        // Predicated region
        $region33: #{siamese_forward.1} parent=11 // pred_check
          %p270 = pneg %p163
        $region34: #{siamese_forward.1} parent=11 // pred_check_branch
          %272 = sbr.rel (%p270) target = $region36
        $region35: #{siamese_forward.1} parent=11 // pred_region
          _
        $region36: #{siamese_forward.1} parent=11 // pred_fallthru
          _
        // Predicated region
        $region37: #{siamese_forward.1} parent=11 // pred_check
          %p273 = pneg %p184
        $region38: #{siamese_forward.1} parent=11 // pred_check_branch
          %275 = sbr.rel (%p273) target = $region40
        $region39: #{siamese_forward.1} parent=11 // pred_region
          _
        $region40: #{siamese_forward.1} parent=11 // pred_fallthru
          _
      $region12: #{siamese_forward.1} parent=5 // pred_fallthru
        _
      %p276 = scmp.lt.s32.totalorder %s15, 2
      // Predicated region
      $region41: #{siamese_forward.1} parent=5 // pred_check
        %p277 = pneg %p276
      $region42: #{siamese_forward.1} parent=5 // pred_check_branch
        %279 = sbr.rel (%p277) target = $region44
      $region43: #{siamese_forward.1} parent=5 // pred_region
        _
      $region44: #{siamese_forward.1} parent=5 // pred_fallthru
        _
      %p280 = scmp.le.s32.totalorder 1, %s15
      %p281 = scmp.lt.s32.totalorder %s15, 3
      %p282 = pnand %p280, %p281
      %p283 = pneg %p282
      // Predicated region
      $region45: #{siamese_forward.1} parent=5 // pred_check
        _
      $region46: #{siamese_forward.1} parent=5 // pred_check_branch
        %285 = sbr.rel (%p282) target = $region48
      $region47: #{siamese_forward.1} parent=5 // pred_region
        %s286 = ssub.s32 %s15, 1
        // Predicated region
        $region49: #{siamese_forward.1} parent=47 // pred_check
          %p287 = pneg %p121
        $region50: #{siamese_forward.1} parent=47 // pred_check_branch
          %289 = sbr.rel (%p287) target = $region52
        $region51: #{siamese_forward.1} parent=47 // pred_region
          %290 = dma.done [#allocation3], 18432
        $region52: #{siamese_forward.1} parent=47 // pred_fallthru
          _
        // Predicated region
        $region53: #{siamese_forward.1} parent=47 // pred_check
          %p291 = pneg %p142
        $region54: #{siamese_forward.1} parent=47 // pred_check_branch
          %293 = sbr.rel (%p291) target = $region56
        $region55: #{siamese_forward.1} parent=47 // pred_region
          %294 = dma.done [#allocation5], 18432
        $region56: #{siamese_forward.1} parent=47 // pred_fallthru
          _
        %p295 = scmp.lt.s32.totalorder %s25, 0
        %s296 = scalar_select %p295, %s25, 0
        %s297 = smul.addr %s296, 8
        %s298 = scalar_lea.vmem %s0, %s297
        %p299 = pneg %p53
        %p300 = pneg %p50
        %p301 = scmp.lt.s32.totalorder %s25, 0
        %s302 = scalar_select %p301, %s25, 0
        %s303 = smul.addr %s302, 8
        %s304 = scalar_lea.vmem %s1, %s303
        %p305 = pneg %p79
        %p306 = pneg %p76
        %p307 = pneg %p100
        %p308 = pneg %p97
        %p309 = pneg %p121
        %p310 = pneg %p118
        %p311 = pneg %p142
        %p312 = pneg %p139
        %p313 = pneg %p163
        %p314 = pneg %p160
        %p315 = pneg %p184
        %p316 = pneg %p181
        %p317 = pneg %p212
        %p318 = pneg %p209
        %p319 = scmp.lt.s32.totalorder %s24, 1
        %s320 = scalar_select %p319, %s24, 1
        %p321 = scmp.lt.s32.totalorder %s25, 0
        %s322 = scalar_select %p321, %s25, 0
        %s323 = sadd.s32 %s322, %s320
        %s324 = smul.addr %s323, 8
        %s325 = scalar_lea.vmem %s7, %s324
        %p326 = scmp.lt.s32.totalorder %s25, 0
        %s327 = scalar_select %p326, %s25, 0
        %s328 = smul.addr %s327, 8
        %s329 = scalar_lea.vmem %s0, %s328
        %p330 = scmp.lt.s32.totalorder %s25, 0
        %s331 = scalar_select %p330, %s25, 0
        %s332 = smul.addr %s331, 8
        %s333 = scalar_lea.vmem %s1, %s332
        %p334 = scmp.lt.s32.totalorder %s24, 1
        %s335 = scalar_select %p334, %s24, 1
        %p336 = scmp.lt.s32.totalorder %s25, 0
        %s337 = scalar_select %p336, %s25, 0
        %s338 = sadd.s32 %s337, %s335
        %s339 = smul.addr %s338, 8
        %s340 = scalar_lea.vmem %s7, %s339
        %p342 = scmp.eq.s32.totalorder %s24, 0
        %v343 = vld [vmem:[%s329] sm:$0xff]
        %v344 = vld [vmem:[%s333] sm:$0xff]
        %s345 = scalar_select %p342, 1, 0
        %v346 = vstv %s345
        %vm347 = vcmp.eq.s32.totalorder %v346, 1
        %v348 = vsel %vm347, %v343, %v344
        %v349 = vpack.c.bf16 %v348, %v348
        %v350 = vld [vmem:[%s6] sm:$0xff]
        %v351 = vld [vmem:[%s6 + $0x8] sm:$0xff]
        %v352 = vld [vmem:[%s6 + $0x10] sm:$0xff]
        %v353 = vld [vmem:[%s2] sm:$0xff]
        %v354 = vld [vmem:[%s2 + $0x8] sm:$0xf]
        %v355 = vld [vmem:[%s2 + $0xc] sm:$0xff]
        %v356 = vld [vmem:[%s2 + $0x14] sm:$0xf]
        %v357 = vld [vmem:[%s2 + $0x18] sm:$0xff]
        %v358 = vld [vmem:[%s2 + $0x20] sm:$0xf]
        %v359 = vld [vmem:[%s2 + $0x24] sm:$0xff]
        %v360 = vld [vmem:[%s2 + $0x2c] sm:$0xf]
        %v361 = vld [vmem:[%s2 + $0x30] sm:$0xff]
        %v362 = vld [vmem:[%s2 + $0x38] sm:$0xf]
        %v363 = vld [vmem:[%s2 + $0x3c] sm:$0xff]
        %v364 = vld [vmem:[%s2 + $0x44] sm:$0xf]
        %v365 = vld [vmem:[%s2 + $0x48] sm:$0xff]
        %v366 = vld [vmem:[%s2 + $0x50] sm:$0xf]
        %v367 = vld [vmem:[%s2 + $0x54] sm:$0xff]
        %v368 = vld [vmem:[%s2 + $0x5c] sm:$0xf]
        %v369 = vld [vmem:[%s2 + $0x60] sm:$0xff]
        %v370 = vld [vmem:[%s2 + $0x68] sm:$0xf]
        %v371 = vld [vmem:[%s2 + $0x6c] sm:$0xff]
        %v372 = vld [vmem:[%s2 + $0x74] sm:$0xf]
        %v373 = vld [vmem:[%s2 + $0x78] sm:$0xff]
        %v374 = vld [vmem:[%s2 + $0x80] sm:$0xf]
        %v375 = vld [vmem:[%s2 + $0x84] sm:$0xff]
        %v376 = vld [vmem:[%s2 + $0x8c] sm:$0xf]
        %v377 = vld [vmem:[%s2 + $0x90] sm:$0xff]
        %v378 = vld [vmem:[%s2 + $0x98] sm:$0xf]
        %v379 = vld [vmem:[%s2 + $0x9c] sm:$0xff]
        %v380 = vld [vmem:[%s2 + $0xa4] sm:$0xf]
        %v381 = vld [vmem:[%s2 + $0xa8] sm:$0xff]
        %v382 = vld [vmem:[%s2 + $0xb0] sm:$0xf]
        %v383 = vld [vmem:[%s2 + $0xb4] sm:$0xff]
        %v384 = vld [vmem:[%s2 + $0xbc] sm:$0xf]
        %v385 = vlaneseq
        %v386 = vshrl.u32 %v385, 7
        %v387 = vsub.s32 0, %v386
        %v388 = vrot.slane %v350, %v387
        %v389 = vlaneseq
        %v390 = vshrl.u32 %v389, 7
        %v391 = vsub.s32 0, %v390
        %v392 = vrot.slane %v351, %v391
        %v393 = vlaneseq
        %v394 = vshrl.u32 %v393, 7
        %v395 = vsub.s32 0, %v394
        %v396 = vrot.slane %v352, %v395
        %v429 = vunpack.c.l.b16 %v353
        %v430 = vunpack.c.h.b16 %v353
        %v431 = vunpack.c.l.b16 %v354
        %v432 = vunpack.c.l.b16 %v355
        %v433 = vunpack.c.h.b16 %v355
        %v434 = vunpack.c.l.b16 %v356
        %v435 = vunpack.c.l.b16 %v357
        %v436 = vunpack.c.h.b16 %v357
        %v437 = vunpack.c.l.b16 %v358
        %v438 = vunpack.c.l.b16 %v359
        %v439 = vunpack.c.h.b16 %v359
        %v440 = vunpack.c.l.b16 %v360
        %v441 = vunpack.c.l.b16 %v361
        %v442 = vunpack.c.h.b16 %v361
        %v443 = vunpack.c.l.b16 %v362
        %v444 = vunpack.c.l.b16 %v363
        %v445 = vunpack.c.h.b16 %v363
        %v446 = vunpack.c.l.b16 %v364
        %v447 = vunpack.c.l.b16 %v365
        %v448 = vunpack.c.h.b16 %v365
        %v449 = vunpack.c.l.b16 %v366
        %v450 = vunpack.c.l.b16 %v367
        %v451 = vunpack.c.h.b16 %v367
        %v452 = vunpack.c.l.b16 %v368
        %v453 = vunpack.c.l.b16 %v369
        %v454 = vunpack.c.h.b16 %v369
        %v455 = vunpack.c.l.b16 %v370
        %v456 = vunpack.c.l.b16 %v371
        %v457 = vunpack.c.h.b16 %v371
        %v458 = vunpack.c.l.b16 %v372
        %v459 = vunpack.c.l.b16 %v373
        %v460 = vunpack.c.h.b16 %v373
        %v461 = vunpack.c.l.b16 %v374
        %v462 = vunpack.c.l.b16 %v375
        %v463 = vunpack.c.h.b16 %v375
        %v464 = vunpack.c.l.b16 %v376
        %v465 = vunpack.c.l.b16 %v377
        %v466 = vunpack.c.h.b16 %v377
        %v467 = vunpack.c.l.b16 %v378
        %v468 = vunpack.c.l.b16 %v379
        %v469 = vunpack.c.h.b16 %v379
        %v470 = vunpack.c.l.b16 %v380
        %v471 = vunpack.c.l.b16 %v381
        %v472 = vunpack.c.h.b16 %v381
        %v473 = vunpack.c.l.b16 %v382
        %v474 = vunpack.c.l.b16 %v383
        %v475 = vunpack.c.h.b16 %v383
        %v476 = vunpack.c.l.b16 %v384
        %v477 = vpack.c.b16 %v432, %v429
        %v478 = vpack.c.b16 %v433, %v430
        %v479 = vpack.c.b16 %v434, %v431
        %v480 = vpack.c.b16 %v438, %v435
        %v481 = vpack.c.b16 %v439, %v436
        %v482 = vpack.c.b16 %v440, %v437
        %v483 = vpack.c.b16 %v444, %v441
        %v484 = vpack.c.b16 %v445, %v442
        %v485 = vpack.c.b16 %v446, %v443
        %v486 = vpack.c.b16 %v450, %v447
        %v487 = vpack.c.b16 %v451, %v448
        %v488 = vpack.c.b16 %v452, %v449
        %v489 = vpack.c.b16 %v456, %v453
        %v490 = vpack.c.b16 %v457, %v454
        %v491 = vpack.c.b16 %v458, %v455
        %v492 = vpack.c.b16 %v462, %v459
        %v493 = vpack.c.b16 %v463, %v460
        %v494 = vpack.c.b16 %v464, %v461
        %v495 = vpack.c.b16 %v468, %v465
        %v496 = vpack.c.b16 %v469, %v466
        %v497 = vpack.c.b16 %v470, %v467
        %v498 = vpack.c.b16 %v474, %v471
        %v499 = vpack.c.b16 %v475, %v472
        %v500 = vpack.c.b16 %v476, %v473
        %525 = vmatprep.subr.bf16.mxu0 %v499
        %526 = vmatpush1.bf16.msra.mxu0 %v498
        %527 = vmatprep.subr.bf16.mxu0 %v496
        %528 = vmatpush1.bf16.msra.mxu0 %v495
        %529 = vmatprep.subr.bf16.mxu0 %v493
        %530 = vmatpush1.bf16.msra.mxu0 %v492
        %531 = vmatprep.subr.bf16.mxu0 %v490
        %532 = vmatpush1.bf16.msra.mxu0 %v489
        %533 = vmatprep.subr.bf16.mxu0 %v487
        %534 = vmatpush1.bf16.msra.mxu0 %v486
        %535 = vmatprep.subr.bf16.mxu0 %v484
        %536 = vmatpush1.bf16.msra.mxu0 %v483
        %537 = vmatprep.subr.bf16.mxu0 %v481
        %538 = vmatpush1.bf16.msra.mxu0 %v480
        %539 = vmatprep.subr.bf16.mxu0 %v478
        %540 = vmatpush1.bf16.msra.mxu0 %v477
        %541 = vmatprep.subr.bf16.mxu0 0
        %542 = vmatpush2.bf16.msra.mxu0 0
        %543 = vmatprep.subr.bf16.mxu0 0
        %544 = vmatpush2.bf16.msra.mxu0 0
        %545 = vmatprep.subr.bf16.mxu0 0
        %546 = vmatpush2.bf16.msra.mxu0 0
        %547 = vmatprep.subr.bf16.mxu0 0
        %548 = vmatpush2.bf16.msra.mxu0 0
        %549 = vmatprep.subr.bf16.mxu0 0
        %550 = vmatpush2.bf16.msra.mxu0 0
        %551 = vmatprep.subr.bf16.mxu0 0
        %552 = vmatpush2.bf16.msra.mxu0 0
        %553 = vmatprep.subr.bf16.mxu0 0
        %554 = vmatpush2.bf16.msra.mxu0 0
        %555 = vmatprep.subr.bf16.mxu0 0
        %556 = vmatpush2.bf16.msra.mxu0 0
        %557 = vmatprep.mubr.bf16.mxu0 0
        %558 = vmatmul.mubr.bf16.gmra.mxu0 %v349
        %v559 = vpop.f32.mrf.mxu0
        %v560 = vadd.f32 %v388, %v559
        %v561 = vpop.f32.mrf.mxu0
        %v562 = vadd.f32 %v392, %v561
        %v563 = vpop.f32.mrf.mxu0
        %v564 = vpop.f32.mrf.mxu0
        %565 = vdwg.mxu0
        %566 = vmatprep.subr.bf16.mxu0 0
        %567 = vmatpush1.bf16.msra.mxu0 %v500
        %568 = vmatprep.subr.bf16.mxu0 0
        %569 = vmatpush1.bf16.msra.mxu0 %v497
        %570 = vmatprep.subr.bf16.mxu0 0
        %571 = vmatpush1.bf16.msra.mxu0 %v494
        %572 = vmatprep.subr.bf16.mxu0 0
        %573 = vmatpush1.bf16.msra.mxu0 %v491
        %574 = vmatprep.subr.bf16.mxu0 0
        %575 = vmatpush1.bf16.msra.mxu0 %v488
        %576 = vmatprep.subr.bf16.mxu0 0
        %577 = vmatpush1.bf16.msra.mxu0 %v485
        %578 = vmatprep.subr.bf16.mxu0 0
        %579 = vmatpush1.bf16.msra.mxu0 %v482
        %580 = vmatprep.subr.bf16.mxu0 0
        %581 = vmatpush1.bf16.msra.mxu0 %v479
        %582 = vmatprep.subr.bf16.mxu0 0
        %583 = vmatpush2.bf16.msra.mxu0 0
        %584 = vmatprep.subr.bf16.mxu0 0
        %585 = vmatpush2.bf16.msra.mxu0 0
        %586 = vmatprep.subr.bf16.mxu0 0
        %587 = vmatpush2.bf16.msra.mxu0 0
        %588 = vmatprep.subr.bf16.mxu0 0
        %589 = vmatpush2.bf16.msra.mxu0 0
        %590 = vmatprep.subr.bf16.mxu0 0
        %591 = vmatpush2.bf16.msra.mxu0 0
        %592 = vmatprep.subr.bf16.mxu0 0
        %593 = vmatpush2.bf16.msra.mxu0 0
        %594 = vmatprep.subr.bf16.mxu0 0
        %595 = vmatpush2.bf16.msra.mxu0 0
        %596 = vmatprep.subr.bf16.mxu0 0
        %597 = vmatpush2.bf16.msra.mxu0 0
        %598 = vmatprep.mubr.bf16.mxu0 0
        %599 = vmatmul.mubr.bf16.gmra.mxu0 %v349
        %v600 = vpop.f32.mrf.mxu0
        %v601 = vadd.f32 %v396, %v600
        %v602 = vpop.f32.mrf.mxu0
        %v603 = vpop.f32.mrf.mxu0
        %v604 = vpop.f32.mrf.mxu0
        %605 = vdwg.mxu0
        %v606 = vmax.f32 %v560, 0.0
        %v607 = vmax.f32 %v562, 0.0
        %v608 = vmax.f32 %v601, 0.0
        %v609 = vpack.c.bf16 %v606, %v606
        %v610 = vpack.c.bf16 %v607, %v607
        %v611 = vpack.c.bf16 %v608, %v608
        %v612 = vld [vmem:[#allocation2] sm:$0xff]
        %v613 = vld [vmem:[#allocation2 + $0x8] sm:$0xff]
        %v614 = vld [vmem:[#allocation2 + $0x10] sm:$0xff]
        %v615 = vld [vmem:[#allocation2 + $0x18] sm:$0xff]
        %v616 = vld [vmem:[#allocation2 + $0x20] sm:$0xff]
        %v617 = vld [vmem:[#allocation2 + $0x28] sm:$0xff]
        %v618 = vld [vmem:[#allocation2 + $0x30] sm:$0xff]
        %v619 = vld [vmem:[#allocation2 + $0x38] sm:$0xff]
        %v620 = vld [vmem:[#allocation2 + $0x40] sm:$0xff]
        %v621 = vld [vmem:[#allocation2 + $0x48] sm:$0xff]
        %v622 = vld [vmem:[#allocation2 + $0x50] sm:$0xff]
        %v623 = vld [vmem:[#allocation2 + $0x58] sm:$0xff]
        %v624 = vld [vmem:[#allocation2 + $0x60] sm:$0xff]
        %v625 = vld [vmem:[#allocation2 + $0x68] sm:$0xff]
        %v626 = vld [vmem:[#allocation2 + $0x70] sm:$0xff]
        %v627 = vld [vmem:[#allocation2 + $0x78] sm:$0xff]
        %v628 = vld [vmem:[#allocation2 + $0x80] sm:$0xff]
        %v629 = vld [vmem:[#allocation2 + $0x88] sm:$0xff]
        %v630 = vld [vmem:[#allocation2 + $0x90] sm:$0xff]
        %v631 = vld [vmem:[#allocation2 + $0x98] sm:$0xff]
        %v632 = vld [vmem:[#allocation2 + $0xa0] sm:$0xff]
        %v633 = vld [vmem:[#allocation2 + $0xa8] sm:$0xff]
        %v634 = vld [vmem:[#allocation2 + $0xb0] sm:$0xff]
        %v635 = vld [vmem:[#allocation2 + $0xb8] sm:$0xff]
        %v636 = vld [vmem:[#allocation2 + $0xc0] sm:$0xff]
        %v637 = vld [vmem:[#allocation2 + $0xc8] sm:$0xff]
        %v638 = vld [vmem:[#allocation2 + $0xd0] sm:$0xff]
        %v639 = vld [vmem:[#allocation2 + $0xd8] sm:$0xff]
        %v640 = vld [vmem:[#allocation2 + $0xe0] sm:$0xff]
        %v641 = vld [vmem:[#allocation2 + $0xe8] sm:$0xff]
        %v642 = vld [vmem:[#allocation2 + $0xf0] sm:$0xff]
        %v643 = vld [vmem:[#allocation2 + $0xf8] sm:$0xff]
        %v644 = vld [vmem:[#allocation2 + $0x100] sm:$0xff]
        %v645 = vld [vmem:[#allocation2 + $0x108] sm:$0xff]
        %v646 = vld [vmem:[#allocation2 + $0x110] sm:$0xff]
        %v647 = vld [vmem:[#allocation2 + $0x118] sm:$0xff]
        %v648 = vld [vmem:[#allocation2 + $0x120] sm:$0xff]
        %v649 = vld [vmem:[#allocation2 + $0x128] sm:$0xff]
        %v650 = vld [vmem:[#allocation2 + $0x130] sm:$0xff]
        %v651 = vld [vmem:[#allocation2 + $0x138] sm:$0xff]
        %v652 = vld [vmem:[#allocation2 + $0x140] sm:$0xff]
        %v653 = vld [vmem:[#allocation2 + $0x148] sm:$0xff]
        %v654 = vld [vmem:[#allocation2 + $0x150] sm:$0xff]
        %v655 = vld [vmem:[#allocation2 + $0x158] sm:$0xff]
        %v656 = vld [vmem:[#allocation2 + $0x160] sm:$0xff]
        %v657 = vld [vmem:[#allocation2 + $0x168] sm:$0xff]
        %v658 = vld [vmem:[#allocation2 + $0x170] sm:$0xff]
        %v659 = vld [vmem:[#allocation2 + $0x178] sm:$0xff]
        %v660 = vlaneseq
        %v661 = vshrl.u32 %v660, 7
        %v662 = vsub.s32 1, %v661
        %v663 = vrot.slane %v350, %v662
        %v664 = vlaneseq
        %v665 = vshrl.u32 %v664, 7
        %v666 = vsub.s32 1, %v665
        %v667 = vrot.slane %v351, %v666
        %v716 = vunpack.c.l.b16 %v612
        %v717 = vunpack.c.h.b16 %v612
        %v718 = vunpack.c.l.b16 %v613
        %v719 = vunpack.c.h.b16 %v613
        %v720 = vunpack.c.l.b16 %v614
        %v721 = vunpack.c.h.b16 %v614
        %v722 = vunpack.c.l.b16 %v615
        %v723 = vunpack.c.h.b16 %v615
        %v724 = vunpack.c.l.b16 %v616
        %v725 = vunpack.c.h.b16 %v616
        %v726 = vunpack.c.l.b16 %v617
        %v727 = vunpack.c.h.b16 %v617
        %v728 = vunpack.c.l.b16 %v618
        %v729 = vunpack.c.h.b16 %v618
        %v730 = vunpack.c.l.b16 %v619
        %v731 = vunpack.c.h.b16 %v619
        %v732 = vunpack.c.l.b16 %v620
        %v733 = vunpack.c.h.b16 %v620
        %v734 = vunpack.c.l.b16 %v621
        %v735 = vunpack.c.h.b16 %v621
        %v736 = vunpack.c.l.b16 %v622
        %v737 = vunpack.c.h.b16 %v622
        %v738 = vunpack.c.l.b16 %v623
        %v739 = vunpack.c.h.b16 %v623
        %v740 = vunpack.c.l.b16 %v624
        %v741 = vunpack.c.h.b16 %v624
        %v742 = vunpack.c.l.b16 %v625
        %v743 = vunpack.c.h.b16 %v625
        %v744 = vunpack.c.l.b16 %v626
        %v745 = vunpack.c.h.b16 %v626
        %v746 = vunpack.c.l.b16 %v627
        %v747 = vunpack.c.h.b16 %v627
        %v748 = vunpack.c.l.b16 %v628
        %v749 = vunpack.c.h.b16 %v628
        %v750 = vunpack.c.l.b16 %v629
        %v751 = vunpack.c.h.b16 %v629
        %v752 = vunpack.c.l.b16 %v630
        %v753 = vunpack.c.h.b16 %v630
        %v754 = vunpack.c.l.b16 %v631
        %v755 = vunpack.c.h.b16 %v631
        %v756 = vunpack.c.l.b16 %v632
        %v757 = vunpack.c.h.b16 %v632
        %v758 = vunpack.c.l.b16 %v633
        %v759 = vunpack.c.h.b16 %v633
        %v760 = vunpack.c.l.b16 %v634
        %v761 = vunpack.c.h.b16 %v634
        %v762 = vunpack.c.l.b16 %v635
        %v763 = vunpack.c.h.b16 %v635
        %v764 = vunpack.c.l.b16 %v636
        %v765 = vunpack.c.h.b16 %v636
        %v766 = vunpack.c.l.b16 %v637
        %v767 = vunpack.c.h.b16 %v637
        %v768 = vunpack.c.l.b16 %v638
        %v769 = vunpack.c.h.b16 %v638
        %v770 = vunpack.c.l.b16 %v639
        %v771 = vunpack.c.h.b16 %v639
        %v772 = vunpack.c.l.b16 %v640
        %v773 = vunpack.c.h.b16 %v640
        %v774 = vunpack.c.l.b16 %v641
        %v775 = vunpack.c.h.b16 %v641
        %v776 = vunpack.c.l.b16 %v642
        %v777 = vunpack.c.h.b16 %v642
        %v778 = vunpack.c.l.b16 %v643
        %v779 = vunpack.c.h.b16 %v643
        %v780 = vunpack.c.l.b16 %v644
        %v781 = vunpack.c.h.b16 %v644
        %v782 = vunpack.c.l.b16 %v645
        %v783 = vunpack.c.h.b16 %v645
        %v784 = vunpack.c.l.b16 %v646
        %v785 = vunpack.c.h.b16 %v646
        %v786 = vunpack.c.l.b16 %v647
        %v787 = vunpack.c.h.b16 %v647
        %v788 = vunpack.c.l.b16 %v648
        %v789 = vunpack.c.h.b16 %v648
        %v790 = vunpack.c.l.b16 %v649
        %v791 = vunpack.c.h.b16 %v649
        %v792 = vunpack.c.l.b16 %v650
        %v793 = vunpack.c.h.b16 %v650
        %v794 = vunpack.c.l.b16 %v651
        %v795 = vunpack.c.h.b16 %v651
        %v796 = vunpack.c.l.b16 %v652
        %v797 = vunpack.c.h.b16 %v652
        %v798 = vunpack.c.l.b16 %v653
        %v799 = vunpack.c.h.b16 %v653
        %v800 = vunpack.c.l.b16 %v654
        %v801 = vunpack.c.h.b16 %v654
        %v802 = vunpack.c.l.b16 %v655
        %v803 = vunpack.c.h.b16 %v655
        %v804 = vunpack.c.l.b16 %v656
        %v805 = vunpack.c.h.b16 %v656
        %v806 = vunpack.c.l.b16 %v657
        %v807 = vunpack.c.h.b16 %v657
        %v808 = vunpack.c.l.b16 %v658
        %v809 = vunpack.c.h.b16 %v658
        %v810 = vunpack.c.l.b16 %v659
        %v811 = vunpack.c.h.b16 %v659
        %v812 = vpack.c.b16 %v718, %v716
        %v813 = vpack.c.b16 %v719, %v717
        %v814 = vpack.c.b16 %v722, %v720
        %v815 = vpack.c.b16 %v723, %v721
        %v816 = vpack.c.b16 %v726, %v724
        %v817 = vpack.c.b16 %v727, %v725
        %v818 = vpack.c.b16 %v730, %v728
        %v819 = vpack.c.b16 %v731, %v729
        %v820 = vpack.c.b16 %v734, %v732
        %v821 = vpack.c.b16 %v735, %v733
        %v822 = vpack.c.b16 %v738, %v736
        %v823 = vpack.c.b16 %v739, %v737
        %v824 = vpack.c.b16 %v742, %v740
        %v825 = vpack.c.b16 %v743, %v741
        %v826 = vpack.c.b16 %v746, %v744
        %v827 = vpack.c.b16 %v747, %v745
        %v828 = vpack.c.b16 %v750, %v748
        %v829 = vpack.c.b16 %v751, %v749
        %v830 = vpack.c.b16 %v754, %v752
        %v831 = vpack.c.b16 %v755, %v753
        %v832 = vpack.c.b16 %v758, %v756
        %v833 = vpack.c.b16 %v759, %v757
        %v834 = vpack.c.b16 %v762, %v760
        %v835 = vpack.c.b16 %v763, %v761
        %v836 = vpack.c.b16 %v766, %v764
        %v837 = vpack.c.b16 %v767, %v765
        %v838 = vpack.c.b16 %v770, %v768
        %v839 = vpack.c.b16 %v771, %v769
        %v840 = vpack.c.b16 %v774, %v772
        %v841 = vpack.c.b16 %v775, %v773
        %v842 = vpack.c.b16 %v778, %v776
        %v843 = vpack.c.b16 %v779, %v777
        %v844 = vpack.c.b16 %v782, %v780
        %v845 = vpack.c.b16 %v783, %v781
        %v846 = vpack.c.b16 %v786, %v784
        %v847 = vpack.c.b16 %v787, %v785
        %v848 = vpack.c.b16 %v790, %v788
        %v849 = vpack.c.b16 %v791, %v789
        %v850 = vpack.c.b16 %v794, %v792
        %v851 = vpack.c.b16 %v795, %v793
        %v852 = vpack.c.b16 %v798, %v796
        %v853 = vpack.c.b16 %v799, %v797
        %v854 = vpack.c.b16 %v802, %v800
        %v855 = vpack.c.b16 %v803, %v801
        %v856 = vpack.c.b16 %v806, %v804
        %v857 = vpack.c.b16 %v807, %v805
        %v858 = vpack.c.b16 %v810, %v808
        %v859 = vpack.c.b16 %v811, %v809
        %908 = vmatprep.subr.bf16.mxu0 %v827
        %909 = vmatpush1.bf16.msra.mxu0 %v826
        %910 = vmatprep.subr.bf16.mxu0 %v825
        %911 = vmatpush1.bf16.msra.mxu0 %v824
        %912 = vmatprep.subr.bf16.mxu0 %v823
        %913 = vmatpush1.bf16.msra.mxu0 %v822
        %914 = vmatprep.subr.bf16.mxu0 %v821
        %915 = vmatpush1.bf16.msra.mxu0 %v820
        %916 = vmatprep.subr.bf16.mxu0 %v819
        %917 = vmatpush1.bf16.msra.mxu0 %v818
        %918 = vmatprep.subr.bf16.mxu0 %v817
        %919 = vmatpush1.bf16.msra.mxu0 %v816
        %920 = vmatprep.subr.bf16.mxu0 %v815
        %921 = vmatpush1.bf16.msra.mxu0 %v814
        %922 = vmatprep.subr.bf16.mxu0 %v813
        %923 = vmatpush1.bf16.msra.mxu0 %v812
        %924 = vmatprep.subr.bf16.mxu0 %v843
        %925 = vmatpush2.bf16.msra.mxu0 %v842
        %926 = vmatprep.subr.bf16.mxu0 %v841
        %927 = vmatpush2.bf16.msra.mxu0 %v840
        %928 = vmatprep.subr.bf16.mxu0 %v839
        %929 = vmatpush2.bf16.msra.mxu0 %v838
        %930 = vmatprep.subr.bf16.mxu0 %v837
        %931 = vmatpush2.bf16.msra.mxu0 %v836
        %932 = vmatprep.subr.bf16.mxu0 %v835
        %933 = vmatpush2.bf16.msra.mxu0 %v834
        %934 = vmatprep.subr.bf16.mxu0 %v833
        %935 = vmatpush2.bf16.msra.mxu0 %v832
        %936 = vmatprep.subr.bf16.mxu0 %v831
        %937 = vmatpush2.bf16.msra.mxu0 %v830
        %938 = vmatprep.subr.bf16.mxu0 %v829
        %939 = vmatpush2.bf16.msra.mxu0 %v828
        %940 = vmatprep.mubr.bf16.mxu0 %v610
        %941 = vmatmul.mubr.bf16.gmra.mxu0 %v609
        %v942 = vpop.f32.mrf.mxu0
        %v943 = vadd.f32 %v663, %v942
        %v944 = vpop.f32.mrf.mxu0
        %v945 = vadd.f32 %v667, %v944
        %v946 = vpop.f32.mrf.mxu0
        %v947 = vpop.f32.mrf.mxu0
        %948 = vdwg.mxu0
        %949 = vmatprep.subr.bf16.mxu0 %v859
        %950 = vmatpush1.bf16.msra.mxu0 %v858
        %951 = vmatprep.subr.bf16.mxu0 %v857
        %952 = vmatpush1.bf16.msra.mxu0 %v856
        %953 = vmatprep.subr.bf16.mxu0 %v855
        %954 = vmatpush1.bf16.msra.mxu0 %v854
        %955 = vmatprep.subr.bf16.mxu0 %v853
        %956 = vmatpush1.bf16.msra.mxu0 %v852
        %957 = vmatprep.subr.bf16.mxu0 %v851
        %958 = vmatpush1.bf16.msra.mxu0 %v850
        %959 = vmatprep.subr.bf16.mxu0 %v849
        %960 = vmatpush1.bf16.msra.mxu0 %v848
        %961 = vmatprep.subr.bf16.mxu0 %v847
        %962 = vmatpush1.bf16.msra.mxu0 %v846
        %963 = vmatprep.subr.bf16.mxu0 %v845
        %964 = vmatpush1.bf16.msra.mxu0 %v844
        %965 = vmatprep.subr.bf16.mxu0 0
        %966 = vmatpush2.bf16.msra.mxu0 0
        %967 = vmatprep.subr.bf16.mxu0 0
        %968 = vmatpush2.bf16.msra.mxu0 0
        %969 = vmatprep.subr.bf16.mxu0 0
        %970 = vmatpush2.bf16.msra.mxu0 0
        %971 = vmatprep.subr.bf16.mxu0 0
        %972 = vmatpush2.bf16.msra.mxu0 0
        %973 = vmatprep.subr.bf16.mxu0 0
        %974 = vmatpush2.bf16.msra.mxu0 0
        %975 = vmatprep.subr.bf16.mxu0 0
        %976 = vmatpush2.bf16.msra.mxu0 0
        %977 = vmatprep.subr.bf16.mxu0 0
        %978 = vmatpush2.bf16.msra.mxu0 0
        %979 = vmatprep.subr.bf16.mxu0 0
        %980 = vmatpush2.bf16.msra.mxu0 0
        %981 = vmatprep.mubr.bf16.mxu0 0
        %982 = vmatmul.mubr.bf16.gmra.mxu0 %v611
        %v983 = vpop.f32.mrf.mxu0
        %v984 = vadd.f32 %v943, %v983
        %v985 = vpop.f32.mrf.mxu0
        %v986 = vadd.f32 %v945, %v985
        %v987 = vpop.f32.mrf.mxu0
        %v988 = vpop.f32.mrf.mxu0
        %989 = vdwg.mxu0
        %v990 = vmax.f32 %v984, 0.0
        %v991 = vmax.f32 %v986, 0.0
        %v992 = vpack.c.bf16 %v990, %v990
        %v993 = vpack.c.bf16 %v991, %v991
        %v994 = vld [vmem:[#allocation4] sm:$0xff]
        %v995 = vld [vmem:[#allocation4 + $0x8] sm:$0xf]
        %v996 = vld [vmem:[#allocation4 + $0xc] sm:$0xff]
        %v997 = vld [vmem:[#allocation4 + $0x14] sm:$0xf]
        %v998 = vld [vmem:[#allocation4 + $0x18] sm:$0xff]
        %v999 = vld [vmem:[#allocation4 + $0x20] sm:$0xf]
        %v1000 = vld [vmem:[#allocation4 + $0x24] sm:$0xff]
        %v1001 = vld [vmem:[#allocation4 + $0x2c] sm:$0xf]
        %v1002 = vld [vmem:[#allocation4 + $0x30] sm:$0xff]
        %v1003 = vld [vmem:[#allocation4 + $0x38] sm:$0xf]
        %v1004 = vld [vmem:[#allocation4 + $0x3c] sm:$0xff]
        %v1005 = vld [vmem:[#allocation4 + $0x44] sm:$0xf]
        %v1006 = vld [vmem:[#allocation4 + $0x48] sm:$0xff]
        %v1007 = vld [vmem:[#allocation4 + $0x50] sm:$0xf]
        %v1008 = vld [vmem:[#allocation4 + $0x54] sm:$0xff]
        %v1009 = vld [vmem:[#allocation4 + $0x5c] sm:$0xf]
        %v1010 = vld [vmem:[#allocation4 + $0x60] sm:$0xff]
        %v1011 = vld [vmem:[#allocation4 + $0x68] sm:$0xf]
        %v1012 = vld [vmem:[#allocation4 + $0x6c] sm:$0xff]
        %v1013 = vld [vmem:[#allocation4 + $0x74] sm:$0xf]
        %v1014 = vld [vmem:[#allocation4 + $0x78] sm:$0xff]
        %v1015 = vld [vmem:[#allocation4 + $0x80] sm:$0xf]
        %v1016 = vld [vmem:[#allocation4 + $0x84] sm:$0xff]
        %v1017 = vld [vmem:[#allocation4 + $0x8c] sm:$0xf]
        %v1018 = vld [vmem:[#allocation4 + $0x90] sm:$0xff]
        %v1019 = vld [vmem:[#allocation4 + $0x98] sm:$0xf]
        %v1020 = vld [vmem:[#allocation4 + $0x9c] sm:$0xff]
        %v1021 = vld [vmem:[#allocation4 + $0xa4] sm:$0xf]
        %v1022 = vld [vmem:[#allocation4 + $0xa8] sm:$0xff]
        %v1023 = vld [vmem:[#allocation4 + $0xb0] sm:$0xf]
        %v1024 = vld [vmem:[#allocation4 + $0xb4] sm:$0xff]
        %v1025 = vld [vmem:[#allocation4 + $0xbc] sm:$0xf]
        %v1026 = vld [vmem:[#allocation4 + $0xc0] sm:$0xff]
        %v1027 = vld [vmem:[#allocation4 + $0xc8] sm:$0xf]
        %v1028 = vld [vmem:[#allocation4 + $0xcc] sm:$0xff]
        %v1029 = vld [vmem:[#allocation4 + $0xd4] sm:$0xf]
        %v1030 = vld [vmem:[#allocation4 + $0xd8] sm:$0xff]
        %v1031 = vld [vmem:[#allocation4 + $0xe0] sm:$0xf]
        %v1032 = vld [vmem:[#allocation4 + $0xe4] sm:$0xff]
        %v1033 = vld [vmem:[#allocation4 + $0xec] sm:$0xf]
        %v1034 = vld [vmem:[#allocation4 + $0xf0] sm:$0xff]
        %v1035 = vld [vmem:[#allocation4 + $0xf8] sm:$0xf]
        %v1036 = vld [vmem:[#allocation4 + $0xfc] sm:$0xff]
        %v1037 = vld [vmem:[#allocation4 + $0x104] sm:$0xf]
        %v1038 = vld [vmem:[#allocation4 + $0x108] sm:$0xff]
        %v1039 = vld [vmem:[#allocation4 + $0x110] sm:$0xf]
        %v1040 = vld [vmem:[#allocation4 + $0x114] sm:$0xff]
        %v1041 = vld [vmem:[#allocation4 + $0x11c] sm:$0xf]
        %v1042 = vld [vmem:[#allocation4 + $0x120] sm:$0xff]
        %v1043 = vld [vmem:[#allocation4 + $0x128] sm:$0xf]
        %v1044 = vld [vmem:[#allocation4 + $0x12c] sm:$0xff]
        %v1045 = vld [vmem:[#allocation4 + $0x134] sm:$0xf]
        %v1046 = vld [vmem:[#allocation4 + $0x138] sm:$0xff]
        %v1047 = vld [vmem:[#allocation4 + $0x140] sm:$0xf]
        %v1048 = vld [vmem:[#allocation4 + $0x144] sm:$0xff]
        %v1049 = vld [vmem:[#allocation4 + $0x14c] sm:$0xf]
        %v1050 = vld [vmem:[#allocation4 + $0x150] sm:$0xff]
        %v1051 = vld [vmem:[#allocation4 + $0x158] sm:$0xf]
        %v1052 = vld [vmem:[#allocation4 + $0x15c] sm:$0xff]
        %v1053 = vld [vmem:[#allocation4 + $0x164] sm:$0xf]
        %v1054 = vld [vmem:[#allocation4 + $0x168] sm:$0xff]
        %v1055 = vld [vmem:[#allocation4 + $0x170] sm:$0xf]
        %v1056 = vld [vmem:[#allocation4 + $0x174] sm:$0xff]
        %v1057 = vld [vmem:[#allocation4 + $0x17c] sm:$0xf]
        %v1058 = vlaneseq
        %v1059 = vshrl.u32 %v1058, 7
        %v1060 = vsub.s32 2, %v1059
        %v1061 = vrot.slane %v350, %v1060
        %v1062 = vlaneseq
        %v1063 = vshrl.u32 %v1062, 7
        %v1064 = vsub.s32 2, %v1063
        %v1065 = vrot.slane %v351, %v1064
        %v1066 = vlaneseq
        %v1067 = vshrl.u32 %v1066, 7
        %v1068 = vsub.s32 2, %v1067
        %v1069 = vrot.slane %v352, %v1068
        %v1134 = vunpack.c.l.b16 %v994
        %v1135 = vunpack.c.h.b16 %v994
        %v1136 = vunpack.c.l.b16 %v995
        %v1137 = vunpack.c.l.b16 %v996
        %v1138 = vunpack.c.h.b16 %v996
        %v1139 = vunpack.c.l.b16 %v997
        %v1140 = vunpack.c.l.b16 %v998
        %v1141 = vunpack.c.h.b16 %v998
        %v1142 = vunpack.c.l.b16 %v999
        %v1143 = vunpack.c.l.b16 %v1000
        %v1144 = vunpack.c.h.b16 %v1000
        %v1145 = vunpack.c.l.b16 %v1001
        %v1146 = vunpack.c.l.b16 %v1002
        %v1147 = vunpack.c.h.b16 %v1002
        %v1148 = vunpack.c.l.b16 %v1003
        %v1149 = vunpack.c.l.b16 %v1004
        %v1150 = vunpack.c.h.b16 %v1004
        %v1151 = vunpack.c.l.b16 %v1005
        %v1152 = vunpack.c.l.b16 %v1006
        %v1153 = vunpack.c.h.b16 %v1006
        %v1154 = vunpack.c.l.b16 %v1007
        %v1155 = vunpack.c.l.b16 %v1008
        %v1156 = vunpack.c.h.b16 %v1008
        %v1157 = vunpack.c.l.b16 %v1009
        %v1158 = vunpack.c.l.b16 %v1010
        %v1159 = vunpack.c.h.b16 %v1010
        %v1160 = vunpack.c.l.b16 %v1011
        %v1161 = vunpack.c.l.b16 %v1012
        %v1162 = vunpack.c.h.b16 %v1012
        %v1163 = vunpack.c.l.b16 %v1013
        %v1164 = vunpack.c.l.b16 %v1014
        %v1165 = vunpack.c.h.b16 %v1014
        %v1166 = vunpack.c.l.b16 %v1015
        %v1167 = vunpack.c.l.b16 %v1016
        %v1168 = vunpack.c.h.b16 %v1016
        %v1169 = vunpack.c.l.b16 %v1017
        %v1170 = vunpack.c.l.b16 %v1018
        %v1171 = vunpack.c.h.b16 %v1018
        %v1172 = vunpack.c.l.b16 %v1019
        %v1173 = vunpack.c.l.b16 %v1020
        %v1174 = vunpack.c.h.b16 %v1020
        %v1175 = vunpack.c.l.b16 %v1021
        %v1176 = vunpack.c.l.b16 %v1022
        %v1177 = vunpack.c.h.b16 %v1022
        %v1178 = vunpack.c.l.b16 %v1023
        %v1179 = vunpack.c.l.b16 %v1024
        %v1180 = vunpack.c.h.b16 %v1024
        %v1181 = vunpack.c.l.b16 %v1025
        %v1182 = vunpack.c.l.b16 %v1026
        %v1183 = vunpack.c.h.b16 %v1026
        %v1184 = vunpack.c.l.b16 %v1027
        %v1185 = vunpack.c.l.b16 %v1028
        %v1186 = vunpack.c.h.b16 %v1028
        %v1187 = vunpack.c.l.b16 %v1029
        %v1188 = vunpack.c.l.b16 %v1030
        %v1189 = vunpack.c.h.b16 %v1030
        %v1190 = vunpack.c.l.b16 %v1031
        %v1191 = vunpack.c.l.b16 %v1032
        %v1192 = vunpack.c.h.b16 %v1032
        %v1193 = vunpack.c.l.b16 %v1033
        %v1194 = vunpack.c.l.b16 %v1034
        %v1195 = vunpack.c.h.b16 %v1034
        %v1196 = vunpack.c.l.b16 %v1035
        %v1197 = vunpack.c.l.b16 %v1036
        %v1198 = vunpack.c.h.b16 %v1036
        %v1199 = vunpack.c.l.b16 %v1037
        %v1200 = vunpack.c.l.b16 %v1038
        %v1201 = vunpack.c.h.b16 %v1038
        %v1202 = vunpack.c.l.b16 %v1039
        %v1203 = vunpack.c.l.b16 %v1040
        %v1204 = vunpack.c.h.b16 %v1040
        %v1205 = vunpack.c.l.b16 %v1041
        %v1206 = vunpack.c.l.b16 %v1042
        %v1207 = vunpack.c.h.b16 %v1042
        %v1208 = vunpack.c.l.b16 %v1043
        %v1209 = vunpack.c.l.b16 %v1044
        %v1210 = vunpack.c.h.b16 %v1044
        %v1211 = vunpack.c.l.b16 %v1045
        %v1212 = vunpack.c.l.b16 %v1046
        %v1213 = vunpack.c.h.b16 %v1046
        %v1214 = vunpack.c.l.b16 %v1047
        %v1215 = vunpack.c.l.b16 %v1048
        %v1216 = vunpack.c.h.b16 %v1048
        %v1217 = vunpack.c.l.b16 %v1049
        %v1218 = vunpack.c.l.b16 %v1050
        %v1219 = vunpack.c.h.b16 %v1050
        %v1220 = vunpack.c.l.b16 %v1051
        %v1221 = vunpack.c.l.b16 %v1052
        %v1222 = vunpack.c.h.b16 %v1052
        %v1223 = vunpack.c.l.b16 %v1053
        %v1224 = vunpack.c.l.b16 %v1054
        %v1225 = vunpack.c.h.b16 %v1054
        %v1226 = vunpack.c.l.b16 %v1055
        %v1227 = vunpack.c.l.b16 %v1056
        %v1228 = vunpack.c.h.b16 %v1056
        %v1229 = vunpack.c.l.b16 %v1057
        %v1230 = vpack.c.b16 %v1137, %v1134
        %v1231 = vpack.c.b16 %v1138, %v1135
        %v1232 = vpack.c.b16 %v1139, %v1136
        %v1233 = vpack.c.b16 %v1143, %v1140
        %v1234 = vpack.c.b16 %v1144, %v1141
        %v1235 = vpack.c.b16 %v1145, %v1142
        %v1236 = vpack.c.b16 %v1149, %v1146
        %v1237 = vpack.c.b16 %v1150, %v1147
        %v1238 = vpack.c.b16 %v1151, %v1148
        %v1239 = vpack.c.b16 %v1155, %v1152
        %v1240 = vpack.c.b16 %v1156, %v1153
        %v1241 = vpack.c.b16 %v1157, %v1154
        %v1242 = vpack.c.b16 %v1161, %v1158
        %v1243 = vpack.c.b16 %v1162, %v1159
        %v1244 = vpack.c.b16 %v1163, %v1160
        %v1245 = vpack.c.b16 %v1167, %v1164
        %v1246 = vpack.c.b16 %v1168, %v1165
        %v1247 = vpack.c.b16 %v1169, %v1166
        %v1248 = vpack.c.b16 %v1173, %v1170
        %v1249 = vpack.c.b16 %v1174, %v1171
        %v1250 = vpack.c.b16 %v1175, %v1172
        %v1251 = vpack.c.b16 %v1179, %v1176
        %v1252 = vpack.c.b16 %v1180, %v1177
        %v1253 = vpack.c.b16 %v1181, %v1178
        %v1254 = vpack.c.b16 %v1185, %v1182
        %v1255 = vpack.c.b16 %v1186, %v1183
        %v1256 = vpack.c.b16 %v1187, %v1184
        %v1257 = vpack.c.b16 %v1191, %v1188
        %v1258 = vpack.c.b16 %v1192, %v1189
        %v1259 = vpack.c.b16 %v1193, %v1190
        %v1260 = vpack.c.b16 %v1197, %v1194
        %v1261 = vpack.c.b16 %v1198, %v1195
        %v1262 = vpack.c.b16 %v1199, %v1196
        %v1263 = vpack.c.b16 %v1203, %v1200
        %v1264 = vpack.c.b16 %v1204, %v1201
        %v1265 = vpack.c.b16 %v1205, %v1202
        %v1266 = vpack.c.b16 %v1209, %v1206
        %v1267 = vpack.c.b16 %v1210, %v1207
        %v1268 = vpack.c.b16 %v1211, %v1208
        %v1269 = vpack.c.b16 %v1215, %v1212
        %v1270 = vpack.c.b16 %v1216, %v1213
        %v1271 = vpack.c.b16 %v1217, %v1214
        %v1272 = vpack.c.b16 %v1221, %v1218
        %v1273 = vpack.c.b16 %v1222, %v1219
        %v1274 = vpack.c.b16 %v1223, %v1220
        %v1275 = vpack.c.b16 %v1227, %v1224
        %v1276 = vpack.c.b16 %v1228, %v1225
        %v1277 = vpack.c.b16 %v1229, %v1226
        %1326 = vmatprep.subr.bf16.mxu0 %v1252
        %1327 = vmatpush1.bf16.msra.mxu0 %v1251
        %1328 = vmatprep.subr.bf16.mxu0 %v1249
        %1329 = vmatpush1.bf16.msra.mxu0 %v1248
        %1330 = vmatprep.subr.bf16.mxu0 %v1246
        %1331 = vmatpush1.bf16.msra.mxu0 %v1245
        %1332 = vmatprep.subr.bf16.mxu0 %v1243
        %1333 = vmatpush1.bf16.msra.mxu0 %v1242
        %1334 = vmatprep.subr.bf16.mxu0 %v1240
        %1335 = vmatpush1.bf16.msra.mxu0 %v1239
        %1336 = vmatprep.subr.bf16.mxu0 %v1237
        %1337 = vmatpush1.bf16.msra.mxu0 %v1236
        %1338 = vmatprep.subr.bf16.mxu0 %v1234
        %1339 = vmatpush1.bf16.msra.mxu0 %v1233
        %1340 = vmatprep.subr.bf16.mxu0 %v1231
        %1341 = vmatpush1.bf16.msra.mxu0 %v1230
        %1342 = vmatprep.subr.bf16.mxu0 %v1276
        %1343 = vmatpush2.bf16.msra.mxu0 %v1275
        %1344 = vmatprep.subr.bf16.mxu0 %v1273
        %1345 = vmatpush2.bf16.msra.mxu0 %v1272
        %1346 = vmatprep.subr.bf16.mxu0 %v1270
        %1347 = vmatpush2.bf16.msra.mxu0 %v1269
        %1348 = vmatprep.subr.bf16.mxu0 %v1267
        %1349 = vmatpush2.bf16.msra.mxu0 %v1266
        %1350 = vmatprep.subr.bf16.mxu0 %v1264
        %1351 = vmatpush2.bf16.msra.mxu0 %v1263
        %1352 = vmatprep.subr.bf16.mxu0 %v1261
        %1353 = vmatpush2.bf16.msra.mxu0 %v1260
        %1354 = vmatprep.subr.bf16.mxu0 %v1258
        %1355 = vmatpush2.bf16.msra.mxu0 %v1257
        %1356 = vmatprep.subr.bf16.mxu0 %v1255
        %1357 = vmatpush2.bf16.msra.mxu0 %v1254
        %1358 = vmatprep.mubr.bf16.mxu0 %v993
        %1359 = vmatmul.mubr.bf16.gmra.mxu0 %v992
        %v1360 = vpop.f32.mrf.mxu0
        %v1361 = vadd.f32 %v1061, %v1360
        %v1362 = vpop.f32.mrf.mxu0
        %v1363 = vadd.f32 %v1065, %v1362
        %v1364 = vpop.f32.mrf.mxu0
        %v1365 = vpop.f32.mrf.mxu0
        %1366 = vdwg.mxu0
        %1367 = vmatprep.subr.bf16.mxu0 0
        %1368 = vmatpush1.bf16.msra.mxu0 %v1253
        %1369 = vmatprep.subr.bf16.mxu0 0
        %1370 = vmatpush1.bf16.msra.mxu0 %v1250
        %1371 = vmatprep.subr.bf16.mxu0 0
        %1372 = vmatpush1.bf16.msra.mxu0 %v1247
        %1373 = vmatprep.subr.bf16.mxu0 0
        %1374 = vmatpush1.bf16.msra.mxu0 %v1244
        %1375 = vmatprep.subr.bf16.mxu0 0
        %1376 = vmatpush1.bf16.msra.mxu0 %v1241
        %1377 = vmatprep.subr.bf16.mxu0 0
        %1378 = vmatpush1.bf16.msra.mxu0 %v1238
        %1379 = vmatprep.subr.bf16.mxu0 0
        %1380 = vmatpush1.bf16.msra.mxu0 %v1235
        %1381 = vmatprep.subr.bf16.mxu0 0
        %1382 = vmatpush1.bf16.msra.mxu0 %v1232
        %1383 = vmatprep.subr.bf16.mxu0 0
        %1384 = vmatpush2.bf16.msra.mxu0 %v1277
        %1385 = vmatprep.subr.bf16.mxu0 0
        %1386 = vmatpush2.bf16.msra.mxu0 %v1274
        %1387 = vmatprep.subr.bf16.mxu0 0
        %1388 = vmatpush2.bf16.msra.mxu0 %v1271
        %1389 = vmatprep.subr.bf16.mxu0 0
        %1390 = vmatpush2.bf16.msra.mxu0 %v1268
        %1391 = vmatprep.subr.bf16.mxu0 0
        %1392 = vmatpush2.bf16.msra.mxu0 %v1265
        %1393 = vmatprep.subr.bf16.mxu0 0
        %1394 = vmatpush2.bf16.msra.mxu0 %v1262
        %1395 = vmatprep.subr.bf16.mxu0 0
        %1396 = vmatpush2.bf16.msra.mxu0 %v1259
        %1397 = vmatprep.subr.bf16.mxu0 0
        %1398 = vmatpush2.bf16.msra.mxu0 %v1256
        %1399 = vmatprep.mubr.bf16.mxu0 %v993
        %1400 = vmatmul.mubr.bf16.gmra.mxu0 %v992
        %v1401 = vpop.f32.mrf.mxu0
        %v1402 = vadd.f32 %v1069, %v1401
        %v1403 = vpop.f32.mrf.mxu0
        %v1404 = vpop.f32.mrf.mxu0
        %v1405 = vpop.f32.mrf.mxu0
        %1406 = vdwg.mxu0
        %v1407 = vmax.f32 %v1361, 0.0
        %v1408 = vmax.f32 %v1363, 0.0
        %v1409 = vmax.f32 %v1402, 0.0
        %v1410 = vpack.c.bf16 %v1407, %v1407
        %v1411 = vpack.c.bf16 %v1408, %v1408
        %v1412 = vpack.c.bf16 %v1409, %v1409
        %s1413 = scalar_lea.vmem [#allocation2], 384
        %v1414 = vld [vmem:[%s1413] sm:$0xff]
        %v1415 = vld [vmem:[%s1413 + $0x8] sm:$0xff]
        %v1416 = vld [vmem:[%s1413 + $0x10] sm:$0xff]
        %v1417 = vld [vmem:[%s1413 + $0x18] sm:$0xff]
        %v1418 = vld [vmem:[%s1413 + $0x20] sm:$0xff]
        %v1419 = vld [vmem:[%s1413 + $0x28] sm:$0xff]
        %v1420 = vld [vmem:[%s1413 + $0x30] sm:$0xff]
        %v1421 = vld [vmem:[%s1413 + $0x38] sm:$0xff]
        %v1422 = vld [vmem:[%s1413 + $0x40] sm:$0xff]
        %v1423 = vld [vmem:[%s1413 + $0x48] sm:$0xff]
        %v1424 = vld [vmem:[%s1413 + $0x50] sm:$0xff]
        %v1425 = vld [vmem:[%s1413 + $0x58] sm:$0xff]
        %v1426 = vld [vmem:[%s1413 + $0x60] sm:$0xff]
        %v1427 = vld [vmem:[%s1413 + $0x68] sm:$0xff]
        %v1428 = vld [vmem:[%s1413 + $0x70] sm:$0xff]
        %v1429 = vld [vmem:[%s1413 + $0x78] sm:$0xff]
        %v1430 = vld [vmem:[%s1413 + $0x80] sm:$0xff]
        %v1431 = vld [vmem:[%s1413 + $0x88] sm:$0xff]
        %v1432 = vld [vmem:[%s1413 + $0x90] sm:$0xff]
        %v1433 = vld [vmem:[%s1413 + $0x98] sm:$0xff]
        %v1434 = vld [vmem:[%s1413 + $0xa0] sm:$0xff]
        %v1435 = vld [vmem:[%s1413 + $0xa8] sm:$0xff]
        %v1436 = vld [vmem:[%s1413 + $0xb0] sm:$0xff]
        %v1437 = vld [vmem:[%s1413 + $0xb8] sm:$0xff]
        %v1438 = vld [vmem:[%s1413 + $0xc0] sm:$0xff]
        %v1439 = vld [vmem:[%s1413 + $0xc8] sm:$0xff]
        %v1440 = vld [vmem:[%s1413 + $0xd0] sm:$0xff]
        %v1441 = vld [vmem:[%s1413 + $0xd8] sm:$0xff]
        %v1442 = vld [vmem:[%s1413 + $0xe0] sm:$0xff]
        %v1443 = vld [vmem:[%s1413 + $0xe8] sm:$0xff]
        %v1444 = vld [vmem:[%s1413 + $0xf0] sm:$0xff]
        %v1445 = vld [vmem:[%s1413 + $0xf8] sm:$0xff]
        %v1446 = vld [vmem:[%s1413 + $0x100] sm:$0xff]
        %v1447 = vld [vmem:[%s1413 + $0x108] sm:$0xff]
        %v1448 = vld [vmem:[%s1413 + $0x110] sm:$0xff]
        %v1449 = vld [vmem:[%s1413 + $0x118] sm:$0xff]
        %v1450 = vld [vmem:[%s1413 + $0x120] sm:$0xff]
        %v1451 = vld [vmem:[%s1413 + $0x128] sm:$0xff]
        %v1452 = vld [vmem:[%s1413 + $0x130] sm:$0xff]
        %v1453 = vld [vmem:[%s1413 + $0x138] sm:$0xff]
        %v1454 = vld [vmem:[%s1413 + $0x140] sm:$0xff]
        %v1455 = vld [vmem:[%s1413 + $0x148] sm:$0xff]
        %v1456 = vld [vmem:[%s1413 + $0x150] sm:$0xff]
        %v1457 = vld [vmem:[%s1413 + $0x158] sm:$0xff]
        %v1458 = vld [vmem:[%s1413 + $0x160] sm:$0xff]
        %v1459 = vld [vmem:[%s1413 + $0x168] sm:$0xff]
        %v1460 = vld [vmem:[%s1413 + $0x170] sm:$0xff]
        %v1461 = vld [vmem:[%s1413 + $0x178] sm:$0xff]
        %v1462 = vlaneseq
        %v1463 = vshrl.u32 %v1462, 7
        %v1464 = vsub.s32 3, %v1463
        %v1465 = vrot.slane %v350, %v1464
        %v1466 = vlaneseq
        %v1467 = vshrl.u32 %v1466, 7
        %v1468 = vsub.s32 3, %v1467
        %v1469 = vrot.slane %v351, %v1468
        %v1518 = vunpack.c.l.b16 %v1414
        %v1519 = vunpack.c.h.b16 %v1414
        %v1520 = vunpack.c.l.b16 %v1415
        %v1521 = vunpack.c.h.b16 %v1415
        %v1522 = vunpack.c.l.b16 %v1416
        %v1523 = vunpack.c.h.b16 %v1416
        %v1524 = vunpack.c.l.b16 %v1417
        %v1525 = vunpack.c.h.b16 %v1417
        %v1526 = vunpack.c.l.b16 %v1418
        %v1527 = vunpack.c.h.b16 %v1418
        %v1528 = vunpack.c.l.b16 %v1419
        %v1529 = vunpack.c.h.b16 %v1419
        %v1530 = vunpack.c.l.b16 %v1420
        %v1531 = vunpack.c.h.b16 %v1420
        %v1532 = vunpack.c.l.b16 %v1421
        %v1533 = vunpack.c.h.b16 %v1421
        %v1534 = vunpack.c.l.b16 %v1422
        %v1535 = vunpack.c.h.b16 %v1422
        %v1536 = vunpack.c.l.b16 %v1423
        %v1537 = vunpack.c.h.b16 %v1423
        %v1538 = vunpack.c.l.b16 %v1424
        %v1539 = vunpack.c.h.b16 %v1424
        %v1540 = vunpack.c.l.b16 %v1425
        %v1541 = vunpack.c.h.b16 %v1425
        %v1542 = vunpack.c.l.b16 %v1426
        %v1543 = vunpack.c.h.b16 %v1426
        %v1544 = vunpack.c.l.b16 %v1427
        %v1545 = vunpack.c.h.b16 %v1427
        %v1546 = vunpack.c.l.b16 %v1428
        %v1547 = vunpack.c.h.b16 %v1428
        %v1548 = vunpack.c.l.b16 %v1429
        %v1549 = vunpack.c.h.b16 %v1429
        %v1550 = vunpack.c.l.b16 %v1430
        %v1551 = vunpack.c.h.b16 %v1430
        %v1552 = vunpack.c.l.b16 %v1431
        %v1553 = vunpack.c.h.b16 %v1431
        %v1554 = vunpack.c.l.b16 %v1432
        %v1555 = vunpack.c.h.b16 %v1432
        %v1556 = vunpack.c.l.b16 %v1433
        %v1557 = vunpack.c.h.b16 %v1433
        %v1558 = vunpack.c.l.b16 %v1434
        %v1559 = vunpack.c.h.b16 %v1434
        %v1560 = vunpack.c.l.b16 %v1435
        %v1561 = vunpack.c.h.b16 %v1435
        %v1562 = vunpack.c.l.b16 %v1436
        %v1563 = vunpack.c.h.b16 %v1436
        %v1564 = vunpack.c.l.b16 %v1437
        %v1565 = vunpack.c.h.b16 %v1437
        %v1566 = vunpack.c.l.b16 %v1438
        %v1567 = vunpack.c.h.b16 %v1438
        %v1568 = vunpack.c.l.b16 %v1439
        %v1569 = vunpack.c.h.b16 %v1439
        %v1570 = vunpack.c.l.b16 %v1440
        %v1571 = vunpack.c.h.b16 %v1440
        %v1572 = vunpack.c.l.b16 %v1441
        %v1573 = vunpack.c.h.b16 %v1441
        %v1574 = vunpack.c.l.b16 %v1442
        %v1575 = vunpack.c.h.b16 %v1442
        %v1576 = vunpack.c.l.b16 %v1443
        %v1577 = vunpack.c.h.b16 %v1443
        %v1578 = vunpack.c.l.b16 %v1444
        %v1579 = vunpack.c.h.b16 %v1444
        %v1580 = vunpack.c.l.b16 %v1445
        %v1581 = vunpack.c.h.b16 %v1445
        %v1582 = vunpack.c.l.b16 %v1446
        %v1583 = vunpack.c.h.b16 %v1446
        %v1584 = vunpack.c.l.b16 %v1447
        %v1585 = vunpack.c.h.b16 %v1447
        %v1586 = vunpack.c.l.b16 %v1448
        %v1587 = vunpack.c.h.b16 %v1448
        %v1588 = vunpack.c.l.b16 %v1449
        %v1589 = vunpack.c.h.b16 %v1449
        %v1590 = vunpack.c.l.b16 %v1450
        %v1591 = vunpack.c.h.b16 %v1450
        %v1592 = vunpack.c.l.b16 %v1451
        %v1593 = vunpack.c.h.b16 %v1451
        %v1594 = vunpack.c.l.b16 %v1452
        %v1595 = vunpack.c.h.b16 %v1452
        %v1596 = vunpack.c.l.b16 %v1453
        %v1597 = vunpack.c.h.b16 %v1453
        %v1598 = vunpack.c.l.b16 %v1454
        %v1599 = vunpack.c.h.b16 %v1454
        %v1600 = vunpack.c.l.b16 %v1455
        %v1601 = vunpack.c.h.b16 %v1455
        %v1602 = vunpack.c.l.b16 %v1456
        %v1603 = vunpack.c.h.b16 %v1456
        %v1604 = vunpack.c.l.b16 %v1457
        %v1605 = vunpack.c.h.b16 %v1457
        %v1606 = vunpack.c.l.b16 %v1458
        %v1607 = vunpack.c.h.b16 %v1458
        %v1608 = vunpack.c.l.b16 %v1459
        %v1609 = vunpack.c.h.b16 %v1459
        %v1610 = vunpack.c.l.b16 %v1460
        %v1611 = vunpack.c.h.b16 %v1460
        %v1612 = vunpack.c.l.b16 %v1461
        %v1613 = vunpack.c.h.b16 %v1461
        %v1614 = vpack.c.b16 %v1520, %v1518
        %v1615 = vpack.c.b16 %v1521, %v1519
        %v1616 = vpack.c.b16 %v1524, %v1522
        %v1617 = vpack.c.b16 %v1525, %v1523
        %v1618 = vpack.c.b16 %v1528, %v1526
        %v1619 = vpack.c.b16 %v1529, %v1527
        %v1620 = vpack.c.b16 %v1532, %v1530
        %v1621 = vpack.c.b16 %v1533, %v1531
        %v1622 = vpack.c.b16 %v1536, %v1534
        %v1623 = vpack.c.b16 %v1537, %v1535
        %v1624 = vpack.c.b16 %v1540, %v1538
        %v1625 = vpack.c.b16 %v1541, %v1539
        %v1626 = vpack.c.b16 %v1544, %v1542
        %v1627 = vpack.c.b16 %v1545, %v1543
        %v1628 = vpack.c.b16 %v1548, %v1546
        %v1629 = vpack.c.b16 %v1549, %v1547
        %v1630 = vpack.c.b16 %v1552, %v1550
        %v1631 = vpack.c.b16 %v1553, %v1551
        %v1632 = vpack.c.b16 %v1556, %v1554
        %v1633 = vpack.c.b16 %v1557, %v1555
        %v1634 = vpack.c.b16 %v1560, %v1558
        %v1635 = vpack.c.b16 %v1561, %v1559
        %v1636 = vpack.c.b16 %v1564, %v1562
        %v1637 = vpack.c.b16 %v1565, %v1563
        %v1638 = vpack.c.b16 %v1568, %v1566
        %v1639 = vpack.c.b16 %v1569, %v1567
        %v1640 = vpack.c.b16 %v1572, %v1570
        %v1641 = vpack.c.b16 %v1573, %v1571
        %v1642 = vpack.c.b16 %v1576, %v1574
        %v1643 = vpack.c.b16 %v1577, %v1575
        %v1644 = vpack.c.b16 %v1580, %v1578
        %v1645 = vpack.c.b16 %v1581, %v1579
        %v1646 = vpack.c.b16 %v1584, %v1582
        %v1647 = vpack.c.b16 %v1585, %v1583
        %v1648 = vpack.c.b16 %v1588, %v1586
        %v1649 = vpack.c.b16 %v1589, %v1587
        %v1650 = vpack.c.b16 %v1592, %v1590
        %v1651 = vpack.c.b16 %v1593, %v1591
        %v1652 = vpack.c.b16 %v1596, %v1594
        %v1653 = vpack.c.b16 %v1597, %v1595
        %v1654 = vpack.c.b16 %v1600, %v1598
        %v1655 = vpack.c.b16 %v1601, %v1599
        %v1656 = vpack.c.b16 %v1604, %v1602
        %v1657 = vpack.c.b16 %v1605, %v1603
        %v1658 = vpack.c.b16 %v1608, %v1606
        %v1659 = vpack.c.b16 %v1609, %v1607
        %v1660 = vpack.c.b16 %v1612, %v1610
        %v1661 = vpack.c.b16 %v1613, %v1611
        %1710 = vmatprep.subr.bf16.mxu0 %v1629
        %1711 = vmatpush1.bf16.msra.mxu0 %v1628
        %1712 = vmatprep.subr.bf16.mxu0 %v1627
        %1713 = vmatpush1.bf16.msra.mxu0 %v1626
        %1714 = vmatprep.subr.bf16.mxu0 %v1625
        %1715 = vmatpush1.bf16.msra.mxu0 %v1624
        %1716 = vmatprep.subr.bf16.mxu0 %v1623
        %1717 = vmatpush1.bf16.msra.mxu0 %v1622
        %1718 = vmatprep.subr.bf16.mxu0 %v1621
        %1719 = vmatpush1.bf16.msra.mxu0 %v1620
        %1720 = vmatprep.subr.bf16.mxu0 %v1619
        %1721 = vmatpush1.bf16.msra.mxu0 %v1618
        %1722 = vmatprep.subr.bf16.mxu0 %v1617
        %1723 = vmatpush1.bf16.msra.mxu0 %v1616
        %1724 = vmatprep.subr.bf16.mxu0 %v1615
        %1725 = vmatpush1.bf16.msra.mxu0 %v1614
        %1726 = vmatprep.subr.bf16.mxu0 %v1645
        %1727 = vmatpush2.bf16.msra.mxu0 %v1644
        %1728 = vmatprep.subr.bf16.mxu0 %v1643
        %1729 = vmatpush2.bf16.msra.mxu0 %v1642
        %1730 = vmatprep.subr.bf16.mxu0 %v1641
        %1731 = vmatpush2.bf16.msra.mxu0 %v1640
        %1732 = vmatprep.subr.bf16.mxu0 %v1639
        %1733 = vmatpush2.bf16.msra.mxu0 %v1638
        %1734 = vmatprep.subr.bf16.mxu0 %v1637
        %1735 = vmatpush2.bf16.msra.mxu0 %v1636
        %1736 = vmatprep.subr.bf16.mxu0 %v1635
        %1737 = vmatpush2.bf16.msra.mxu0 %v1634
        %1738 = vmatprep.subr.bf16.mxu0 %v1633
        %1739 = vmatpush2.bf16.msra.mxu0 %v1632
        %1740 = vmatprep.subr.bf16.mxu0 %v1631
        %1741 = vmatpush2.bf16.msra.mxu0 %v1630
        %1742 = vmatprep.mubr.bf16.mxu0 %v1411
        %1743 = vmatmul.mubr.bf16.gmra.mxu0 %v1410
        %v1744 = vpop.f32.mrf.mxu0
        %v1745 = vadd.f32 %v1465, %v1744
        %v1746 = vpop.f32.mrf.mxu0
        %v1747 = vadd.f32 %v1469, %v1746
        %v1748 = vpop.f32.mrf.mxu0
        %v1749 = vpop.f32.mrf.mxu0
        %1750 = vdwg.mxu0
        %1751 = vmatprep.subr.bf16.mxu0 %v1661
        %1752 = vmatpush1.bf16.msra.mxu0 %v1660
        %1753 = vmatprep.subr.bf16.mxu0 %v1659
        %1754 = vmatpush1.bf16.msra.mxu0 %v1658
        %1755 = vmatprep.subr.bf16.mxu0 %v1657
        %1756 = vmatpush1.bf16.msra.mxu0 %v1656
        %1757 = vmatprep.subr.bf16.mxu0 %v1655
        %1758 = vmatpush1.bf16.msra.mxu0 %v1654
        %1759 = vmatprep.subr.bf16.mxu0 %v1653
        %1760 = vmatpush1.bf16.msra.mxu0 %v1652
        %1761 = vmatprep.subr.bf16.mxu0 %v1651
        %1762 = vmatpush1.bf16.msra.mxu0 %v1650
        %1763 = vmatprep.subr.bf16.mxu0 %v1649
        %1764 = vmatpush1.bf16.msra.mxu0 %v1648
        %1765 = vmatprep.subr.bf16.mxu0 %v1647
        %1766 = vmatpush1.bf16.msra.mxu0 %v1646
        %1767 = vmatprep.subr.bf16.mxu0 0
        %1768 = vmatpush2.bf16.msra.mxu0 0
        %1769 = vmatprep.subr.bf16.mxu0 0
        %1770 = vmatpush2.bf16.msra.mxu0 0
        %1771 = vmatprep.subr.bf16.mxu0 0
        %1772 = vmatpush2.bf16.msra.mxu0 0
        %1773 = vmatprep.subr.bf16.mxu0 0
        %1774 = vmatpush2.bf16.msra.mxu0 0
        %1775 = vmatprep.subr.bf16.mxu0 0
        %1776 = vmatpush2.bf16.msra.mxu0 0
        %1777 = vmatprep.subr.bf16.mxu0 0
        %1778 = vmatpush2.bf16.msra.mxu0 0
        %1779 = vmatprep.subr.bf16.mxu0 0
        %1780 = vmatpush2.bf16.msra.mxu0 0
        %1781 = vmatprep.subr.bf16.mxu0 0
        %1782 = vmatpush2.bf16.msra.mxu0 0
        %1783 = vmatprep.mubr.bf16.mxu0 0
        %1784 = vmatmul.mubr.bf16.gmra.mxu0 %v1412
        %v1785 = vpop.f32.mrf.mxu0
        %v1786 = vadd.f32 %v1745, %v1785
        %v1787 = vpop.f32.mrf.mxu0
        %v1788 = vadd.f32 %v1747, %v1787
        %v1789 = vpop.f32.mrf.mxu0
        %v1790 = vpop.f32.mrf.mxu0
        %1791 = vdwg.mxu0
        %v1792 = vmax.f32 %v1786, 0.0
        %v1793 = vmax.f32 %v1788, 0.0
        %v1794 = vpack.c.bf16 %v1792, %v1792
        %v1795 = vpack.c.bf16 %v1793, %v1793
        %s1796 = scalar_lea.vmem [#allocation4], 384
        %v1797 = vld [vmem:[%s1796] sm:$0xff]
        %v1798 = vld [vmem:[%s1796 + $0x8] sm:$0xf]
        %v1799 = vld [vmem:[%s1796 + $0xc] sm:$0xff]
        %v1800 = vld [vmem:[%s1796 + $0x14] sm:$0xf]
        %v1801 = vld [vmem:[%s1796 + $0x18] sm:$0xff]
        %v1802 = vld [vmem:[%s1796 + $0x20] sm:$0xf]
        %v1803 = vld [vmem:[%s1796 + $0x24] sm:$0xff]
        %v1804 = vld [vmem:[%s1796 + $0x2c] sm:$0xf]
        %v1805 = vld [vmem:[%s1796 + $0x30] sm:$0xff]
        %v1806 = vld [vmem:[%s1796 + $0x38] sm:$0xf]
        %v1807 = vld [vmem:[%s1796 + $0x3c] sm:$0xff]
        %v1808 = vld [vmem:[%s1796 + $0x44] sm:$0xf]
        %v1809 = vld [vmem:[%s1796 + $0x48] sm:$0xff]
        %v1810 = vld [vmem:[%s1796 + $0x50] sm:$0xf]
        %v1811 = vld [vmem:[%s1796 + $0x54] sm:$0xff]
        %v1812 = vld [vmem:[%s1796 + $0x5c] sm:$0xf]
        %v1813 = vld [vmem:[%s1796 + $0x60] sm:$0xff]
        %v1814 = vld [vmem:[%s1796 + $0x68] sm:$0xf]
        %v1815 = vld [vmem:[%s1796 + $0x6c] sm:$0xff]
        %v1816 = vld [vmem:[%s1796 + $0x74] sm:$0xf]
        %v1817 = vld [vmem:[%s1796 + $0x78] sm:$0xff]
        %v1818 = vld [vmem:[%s1796 + $0x80] sm:$0xf]
        %v1819 = vld [vmem:[%s1796 + $0x84] sm:$0xff]
        %v1820 = vld [vmem:[%s1796 + $0x8c] sm:$0xf]
        %v1821 = vld [vmem:[%s1796 + $0x90] sm:$0xff]
        %v1822 = vld [vmem:[%s1796 + $0x98] sm:$0xf]
        %v1823 = vld [vmem:[%s1796 + $0x9c] sm:$0xff]
        %v1824 = vld [vmem:[%s1796 + $0xa4] sm:$0xf]
        %v1825 = vld [vmem:[%s1796 + $0xa8] sm:$0xff]
        %v1826 = vld [vmem:[%s1796 + $0xb0] sm:$0xf]
        %v1827 = vld [vmem:[%s1796 + $0xb4] sm:$0xff]
        %v1828 = vld [vmem:[%s1796 + $0xbc] sm:$0xf]
        %v1829 = vld [vmem:[%s1796 + $0xc0] sm:$0xff]
        %v1830 = vld [vmem:[%s1796 + $0xc8] sm:$0xf]
        %v1831 = vld [vmem:[%s1796 + $0xcc] sm:$0xff]
        %v1832 = vld [vmem:[%s1796 + $0xd4] sm:$0xf]
        %v1833 = vld [vmem:[%s1796 + $0xd8] sm:$0xff]
        %v1834 = vld [vmem:[%s1796 + $0xe0] sm:$0xf]
        %v1835 = vld [vmem:[%s1796 + $0xe4] sm:$0xff]
        %v1836 = vld [vmem:[%s1796 + $0xec] sm:$0xf]
        %v1837 = vld [vmem:[%s1796 + $0xf0] sm:$0xff]
        %v1838 = vld [vmem:[%s1796 + $0xf8] sm:$0xf]
        %v1839 = vld [vmem:[%s1796 + $0xfc] sm:$0xff]
        %v1840 = vld [vmem:[%s1796 + $0x104] sm:$0xf]
        %v1841 = vld [vmem:[%s1796 + $0x108] sm:$0xff]
        %v1842 = vld [vmem:[%s1796 + $0x110] sm:$0xf]
        %v1843 = vld [vmem:[%s1796 + $0x114] sm:$0xff]
        %v1844 = vld [vmem:[%s1796 + $0x11c] sm:$0xf]
        %v1845 = vld [vmem:[%s1796 + $0x120] sm:$0xff]
        %v1846 = vld [vmem:[%s1796 + $0x128] sm:$0xf]
        %v1847 = vld [vmem:[%s1796 + $0x12c] sm:$0xff]
        %v1848 = vld [vmem:[%s1796 + $0x134] sm:$0xf]
        %v1849 = vld [vmem:[%s1796 + $0x138] sm:$0xff]
        %v1850 = vld [vmem:[%s1796 + $0x140] sm:$0xf]
        %v1851 = vld [vmem:[%s1796 + $0x144] sm:$0xff]
        %v1852 = vld [vmem:[%s1796 + $0x14c] sm:$0xf]
        %v1853 = vld [vmem:[%s1796 + $0x150] sm:$0xff]
        %v1854 = vld [vmem:[%s1796 + $0x158] sm:$0xf]
        %v1855 = vld [vmem:[%s1796 + $0x15c] sm:$0xff]
        %v1856 = vld [vmem:[%s1796 + $0x164] sm:$0xf]
        %v1857 = vld [vmem:[%s1796 + $0x168] sm:$0xff]
        %v1858 = vld [vmem:[%s1796 + $0x170] sm:$0xf]
        %v1859 = vld [vmem:[%s1796 + $0x174] sm:$0xff]
        %v1860 = vld [vmem:[%s1796 + $0x17c] sm:$0xf]
        %v1861 = vlaneseq
        %v1862 = vshrl.u32 %v1861, 7
        %v1863 = vsub.s32 4, %v1862
        %v1864 = vrot.slane %v350, %v1863
        %v1865 = vlaneseq
        %v1866 = vshrl.u32 %v1865, 7
        %v1867 = vsub.s32 4, %v1866
        %v1868 = vrot.slane %v351, %v1867
        %v1869 = vlaneseq
        %v1870 = vshrl.u32 %v1869, 7
        %v1871 = vsub.s32 4, %v1870
        %v1872 = vrot.slane %v352, %v1871
        %v1937 = vunpack.c.l.b16 %v1797
        %v1938 = vunpack.c.h.b16 %v1797
        %v1939 = vunpack.c.l.b16 %v1798
        %v1940 = vunpack.c.l.b16 %v1799
        %v1941 = vunpack.c.h.b16 %v1799
        %v1942 = vunpack.c.l.b16 %v1800
        %v1943 = vunpack.c.l.b16 %v1801
        %v1944 = vunpack.c.h.b16 %v1801
        %v1945 = vunpack.c.l.b16 %v1802
        %v1946 = vunpack.c.l.b16 %v1803
        %v1947 = vunpack.c.h.b16 %v1803
        %v1948 = vunpack.c.l.b16 %v1804
        %v1949 = vunpack.c.l.b16 %v1805
        %v1950 = vunpack.c.h.b16 %v1805
        %v1951 = vunpack.c.l.b16 %v1806
        %v1952 = vunpack.c.l.b16 %v1807
        %v1953 = vunpack.c.h.b16 %v1807
        %v1954 = vunpack.c.l.b16 %v1808
        %v1955 = vunpack.c.l.b16 %v1809
        %v1956 = vunpack.c.h.b16 %v1809
        %v1957 = vunpack.c.l.b16 %v1810
        %v1958 = vunpack.c.l.b16 %v1811
        %v1959 = vunpack.c.h.b16 %v1811
        %v1960 = vunpack.c.l.b16 %v1812
        %v1961 = vunpack.c.l.b16 %v1813
        %v1962 = vunpack.c.h.b16 %v1813
        %v1963 = vunpack.c.l.b16 %v1814
        %v1964 = vunpack.c.l.b16 %v1815
        %v1965 = vunpack.c.h.b16 %v1815
        %v1966 = vunpack.c.l.b16 %v1816
        %v1967 = vunpack.c.l.b16 %v1817
        %v1968 = vunpack.c.h.b16 %v1817
        %v1969 = vunpack.c.l.b16 %v1818
        %v1970 = vunpack.c.l.b16 %v1819
        %v1971 = vunpack.c.h.b16 %v1819
        %v1972 = vunpack.c.l.b16 %v1820
        %v1973 = vunpack.c.l.b16 %v1821
        %v1974 = vunpack.c.h.b16 %v1821
        %v1975 = vunpack.c.l.b16 %v1822
        %v1976 = vunpack.c.l.b16 %v1823
        %v1977 = vunpack.c.h.b16 %v1823
        %v1978 = vunpack.c.l.b16 %v1824
        %v1979 = vunpack.c.l.b16 %v1825
        %v1980 = vunpack.c.h.b16 %v1825
        %v1981 = vunpack.c.l.b16 %v1826
        %v1982 = vunpack.c.l.b16 %v1827
        %v1983 = vunpack.c.h.b16 %v1827
        %v1984 = vunpack.c.l.b16 %v1828
        %v1985 = vunpack.c.l.b16 %v1829
        %v1986 = vunpack.c.h.b16 %v1829
        %v1987 = vunpack.c.l.b16 %v1830
        %v1988 = vunpack.c.l.b16 %v1831
        %v1989 = vunpack.c.h.b16 %v1831
        %v1990 = vunpack.c.l.b16 %v1832
        %v1991 = vunpack.c.l.b16 %v1833
        %v1992 = vunpack.c.h.b16 %v1833
        %v1993 = vunpack.c.l.b16 %v1834
        %v1994 = vunpack.c.l.b16 %v1835
        %v1995 = vunpack.c.h.b16 %v1835
        %v1996 = vunpack.c.l.b16 %v1836
        %v1997 = vunpack.c.l.b16 %v1837
        %v1998 = vunpack.c.h.b16 %v1837
        %v1999 = vunpack.c.l.b16 %v1838
        %v2000 = vunpack.c.l.b16 %v1839
        %v2001 = vunpack.c.h.b16 %v1839
        %v2002 = vunpack.c.l.b16 %v1840
        %v2003 = vunpack.c.l.b16 %v1841
        %v2004 = vunpack.c.h.b16 %v1841
        %v2005 = vunpack.c.l.b16 %v1842
        %v2006 = vunpack.c.l.b16 %v1843
        %v2007 = vunpack.c.h.b16 %v1843
        %v2008 = vunpack.c.l.b16 %v1844
        %v2009 = vunpack.c.l.b16 %v1845
        %v2010 = vunpack.c.h.b16 %v1845
        %v2011 = vunpack.c.l.b16 %v1846
        %v2012 = vunpack.c.l.b16 %v1847
        %v2013 = vunpack.c.h.b16 %v1847
        %v2014 = vunpack.c.l.b16 %v1848
        %v2015 = vunpack.c.l.b16 %v1849
        %v2016 = vunpack.c.h.b16 %v1849
        %v2017 = vunpack.c.l.b16 %v1850
        %v2018 = vunpack.c.l.b16 %v1851
        %v2019 = vunpack.c.h.b16 %v1851
        %v2020 = vunpack.c.l.b16 %v1852
        %v2021 = vunpack.c.l.b16 %v1853
        %v2022 = vunpack.c.h.b16 %v1853
        %v2023 = vunpack.c.l.b16 %v1854
        %v2024 = vunpack.c.l.b16 %v1855
        %v2025 = vunpack.c.h.b16 %v1855
        %v2026 = vunpack.c.l.b16 %v1856
        %v2027 = vunpack.c.l.b16 %v1857
        %v2028 = vunpack.c.h.b16 %v1857
        %v2029 = vunpack.c.l.b16 %v1858
        %v2030 = vunpack.c.l.b16 %v1859
        %v2031 = vunpack.c.h.b16 %v1859
        %v2032 = vunpack.c.l.b16 %v1860
        %v2033 = vpack.c.b16 %v1940, %v1937
        %v2034 = vpack.c.b16 %v1941, %v1938
        %v2035 = vpack.c.b16 %v1942, %v1939
        %v2036 = vpack.c.b16 %v1946, %v1943
        %v2037 = vpack.c.b16 %v1947, %v1944
        %v2038 = vpack.c.b16 %v1948, %v1945
        %v2039 = vpack.c.b16 %v1952, %v1949
        %v2040 = vpack.c.b16 %v1953, %v1950
        %v2041 = vpack.c.b16 %v1954, %v1951
        %v2042 = vpack.c.b16 %v1958, %v1955
        %v2043 = vpack.c.b16 %v1959, %v1956
        %v2044 = vpack.c.b16 %v1960, %v1957
        %v2045 = vpack.c.b16 %v1964, %v1961
        %v2046 = vpack.c.b16 %v1965, %v1962
        %v2047 = vpack.c.b16 %v1966, %v1963
        %v2048 = vpack.c.b16 %v1970, %v1967
        %v2049 = vpack.c.b16 %v1971, %v1968
        %v2050 = vpack.c.b16 %v1972, %v1969
        %v2051 = vpack.c.b16 %v1976, %v1973
        %v2052 = vpack.c.b16 %v1977, %v1974
        %v2053 = vpack.c.b16 %v1978, %v1975
        %v2054 = vpack.c.b16 %v1982, %v1979
        %v2055 = vpack.c.b16 %v1983, %v1980
        %v2056 = vpack.c.b16 %v1984, %v1981
        %v2057 = vpack.c.b16 %v1988, %v1985
        %v2058 = vpack.c.b16 %v1989, %v1986
        %v2059 = vpack.c.b16 %v1990, %v1987
        %v2060 = vpack.c.b16 %v1994, %v1991
        %v2061 = vpack.c.b16 %v1995, %v1992
        %v2062 = vpack.c.b16 %v1996, %v1993
        %v2063 = vpack.c.b16 %v2000, %v1997
        %v2064 = vpack.c.b16 %v2001, %v1998
        %v2065 = vpack.c.b16 %v2002, %v1999
        %v2066 = vpack.c.b16 %v2006, %v2003
        %v2067 = vpack.c.b16 %v2007, %v2004
        %v2068 = vpack.c.b16 %v2008, %v2005
        %v2069 = vpack.c.b16 %v2012, %v2009
        %v2070 = vpack.c.b16 %v2013, %v2010
        %v2071 = vpack.c.b16 %v2014, %v2011
        %v2072 = vpack.c.b16 %v2018, %v2015
        %v2073 = vpack.c.b16 %v2019, %v2016
        %v2074 = vpack.c.b16 %v2020, %v2017
        %v2075 = vpack.c.b16 %v2024, %v2021
        %v2076 = vpack.c.b16 %v2025, %v2022
        %v2077 = vpack.c.b16 %v2026, %v2023
        %v2078 = vpack.c.b16 %v2030, %v2027
        %v2079 = vpack.c.b16 %v2031, %v2028
        %v2080 = vpack.c.b16 %v2032, %v2029
        %2129 = vmatprep.subr.bf16.mxu0 %v2055
        %2130 = vmatpush1.bf16.msra.mxu0 %v2054
        %2131 = vmatprep.subr.bf16.mxu0 %v2052
        %2132 = vmatpush1.bf16.msra.mxu0 %v2051
        %2133 = vmatprep.subr.bf16.mxu0 %v2049
        %2134 = vmatpush1.bf16.msra.mxu0 %v2048
        %2135 = vmatprep.subr.bf16.mxu0 %v2046
        %2136 = vmatpush1.bf16.msra.mxu0 %v2045
        %2137 = vmatprep.subr.bf16.mxu0 %v2043
        %2138 = vmatpush1.bf16.msra.mxu0 %v2042
        %2139 = vmatprep.subr.bf16.mxu0 %v2040
        %2140 = vmatpush1.bf16.msra.mxu0 %v2039
        %2141 = vmatprep.subr.bf16.mxu0 %v2037
        %2142 = vmatpush1.bf16.msra.mxu0 %v2036
        %2143 = vmatprep.subr.bf16.mxu0 %v2034
        %2144 = vmatpush1.bf16.msra.mxu0 %v2033
        %2145 = vmatprep.subr.bf16.mxu0 %v2079
        %2146 = vmatpush2.bf16.msra.mxu0 %v2078
        %2147 = vmatprep.subr.bf16.mxu0 %v2076
        %2148 = vmatpush2.bf16.msra.mxu0 %v2075
        %2149 = vmatprep.subr.bf16.mxu0 %v2073
        %2150 = vmatpush2.bf16.msra.mxu0 %v2072
        %2151 = vmatprep.subr.bf16.mxu0 %v2070
        %2152 = vmatpush2.bf16.msra.mxu0 %v2069
        %2153 = vmatprep.subr.bf16.mxu0 %v2067
        %2154 = vmatpush2.bf16.msra.mxu0 %v2066
        %2155 = vmatprep.subr.bf16.mxu0 %v2064
        %2156 = vmatpush2.bf16.msra.mxu0 %v2063
        %2157 = vmatprep.subr.bf16.mxu0 %v2061
        %2158 = vmatpush2.bf16.msra.mxu0 %v2060
        %2159 = vmatprep.subr.bf16.mxu0 %v2058
        %2160 = vmatpush2.bf16.msra.mxu0 %v2057
        %2161 = vmatprep.mubr.bf16.mxu0 %v1795
        %2162 = vmatmul.mubr.bf16.gmra.mxu0 %v1794
        %v2163 = vpop.f32.mrf.mxu0
        %v2164 = vadd.f32 %v1864, %v2163
        %v2165 = vpop.f32.mrf.mxu0
        %v2166 = vadd.f32 %v1868, %v2165
        %v2167 = vpop.f32.mrf.mxu0
        %v2168 = vpop.f32.mrf.mxu0
        %2169 = vdwg.mxu0
        %2170 = vmatprep.subr.bf16.mxu0 0
        %2171 = vmatpush1.bf16.msra.mxu0 %v2056
        %2172 = vmatprep.subr.bf16.mxu0 0
        %2173 = vmatpush1.bf16.msra.mxu0 %v2053
        %2174 = vmatprep.subr.bf16.mxu0 0
        %2175 = vmatpush1.bf16.msra.mxu0 %v2050
        %2176 = vmatprep.subr.bf16.mxu0 0
        %2177 = vmatpush1.bf16.msra.mxu0 %v2047
        %2178 = vmatprep.subr.bf16.mxu0 0
        %2179 = vmatpush1.bf16.msra.mxu0 %v2044
        %2180 = vmatprep.subr.bf16.mxu0 0
        %2181 = vmatpush1.bf16.msra.mxu0 %v2041
        %2182 = vmatprep.subr.bf16.mxu0 0
        %2183 = vmatpush1.bf16.msra.mxu0 %v2038
        %2184 = vmatprep.subr.bf16.mxu0 0
        %2185 = vmatpush1.bf16.msra.mxu0 %v2035
        %2186 = vmatprep.subr.bf16.mxu0 0
        %2187 = vmatpush2.bf16.msra.mxu0 %v2080
        %2188 = vmatprep.subr.bf16.mxu0 0
        %2189 = vmatpush2.bf16.msra.mxu0 %v2077
        %2190 = vmatprep.subr.bf16.mxu0 0
        %2191 = vmatpush2.bf16.msra.mxu0 %v2074
        %2192 = vmatprep.subr.bf16.mxu0 0
        %2193 = vmatpush2.bf16.msra.mxu0 %v2071
        %2194 = vmatprep.subr.bf16.mxu0 0
        %2195 = vmatpush2.bf16.msra.mxu0 %v2068
        %2196 = vmatprep.subr.bf16.mxu0 0
        %2197 = vmatpush2.bf16.msra.mxu0 %v2065
        %2198 = vmatprep.subr.bf16.mxu0 0
        %2199 = vmatpush2.bf16.msra.mxu0 %v2062
        %2200 = vmatprep.subr.bf16.mxu0 0
        %2201 = vmatpush2.bf16.msra.mxu0 %v2059
        %2202 = vmatprep.mubr.bf16.mxu0 %v1795
        %2203 = vmatmul.mubr.bf16.gmra.mxu0 %v1794
        %v2204 = vpop.f32.mrf.mxu0
        %v2205 = vadd.f32 %v1872, %v2204
        %v2206 = vpop.f32.mrf.mxu0
        %v2207 = vpop.f32.mrf.mxu0
        %v2208 = vpop.f32.mrf.mxu0
        %2209 = vdwg.mxu0
        %v2210 = vmax.f32 %v2164, 0.0
        %v2211 = vmax.f32 %v2166, 0.0
        %v2212 = vmax.f32 %v2205, 0.0
        %v2213 = vpack.c.bf16 %v2210, %v2210
        %v2214 = vpack.c.bf16 %v2211, %v2211
        %v2215 = vpack.c.bf16 %v2212, %v2212
        %s2216 = scalar_lea.vmem [#allocation2], 768
        %v2217 = vld [vmem:[%s2216] sm:$0xff]
        %v2218 = vld [vmem:[%s2216 + $0x8] sm:$0xff]
        %v2219 = vld [vmem:[%s2216 + $0x10] sm:$0xff]
        %v2220 = vld [vmem:[%s2216 + $0x18] sm:$0xff]
        %v2221 = vld [vmem:[%s2216 + $0x20] sm:$0xff]
        %v2222 = vld [vmem:[%s2216 + $0x28] sm:$0xff]
        %v2223 = vld [vmem:[%s2216 + $0x30] sm:$0xff]
        %v2224 = vld [vmem:[%s2216 + $0x38] sm:$0xff]
        %v2225 = vld [vmem:[%s2216 + $0x40] sm:$0xff]
        %v2226 = vld [vmem:[%s2216 + $0x48] sm:$0xff]
        %v2227 = vld [vmem:[%s2216 + $0x50] sm:$0xff]
        %v2228 = vld [vmem:[%s2216 + $0x58] sm:$0xff]
        %v2229 = vld [vmem:[%s2216 + $0x60] sm:$0xff]
        %v2230 = vld [vmem:[%s2216 + $0x68] sm:$0xff]
        %v2231 = vld [vmem:[%s2216 + $0x70] sm:$0xff]
        %v2232 = vld [vmem:[%s2216 + $0x78] sm:$0xff]
        %v2233 = vld [vmem:[%s2216 + $0x80] sm:$0xff]
        %v2234 = vld [vmem:[%s2216 + $0x88] sm:$0xff]
        %v2235 = vld [vmem:[%s2216 + $0x90] sm:$0xff]
        %v2236 = vld [vmem:[%s2216 + $0x98] sm:$0xff]
        %v2237 = vld [vmem:[%s2216 + $0xa0] sm:$0xff]
        %v2238 = vld [vmem:[%s2216 + $0xa8] sm:$0xff]
        %v2239 = vld [vmem:[%s2216 + $0xb0] sm:$0xff]
        %v2240 = vld [vmem:[%s2216 + $0xb8] sm:$0xff]
        %v2241 = vld [vmem:[%s2216 + $0xc0] sm:$0xff]
        %v2242 = vld [vmem:[%s2216 + $0xc8] sm:$0xff]
        %v2243 = vld [vmem:[%s2216 + $0xd0] sm:$0xff]
        %v2244 = vld [vmem:[%s2216 + $0xd8] sm:$0xff]
        %v2245 = vld [vmem:[%s2216 + $0xe0] sm:$0xff]
        %v2246 = vld [vmem:[%s2216 + $0xe8] sm:$0xff]
        %v2247 = vld [vmem:[%s2216 + $0xf0] sm:$0xff]
        %v2248 = vld [vmem:[%s2216 + $0xf8] sm:$0xff]
        %v2249 = vld [vmem:[%s2216 + $0x100] sm:$0xff]
        %v2250 = vld [vmem:[%s2216 + $0x108] sm:$0xff]
        %v2251 = vld [vmem:[%s2216 + $0x110] sm:$0xff]
        %v2252 = vld [vmem:[%s2216 + $0x118] sm:$0xff]
        %v2253 = vld [vmem:[%s2216 + $0x120] sm:$0xff]
        %v2254 = vld [vmem:[%s2216 + $0x128] sm:$0xff]
        %v2255 = vld [vmem:[%s2216 + $0x130] sm:$0xff]
        %v2256 = vld [vmem:[%s2216 + $0x138] sm:$0xff]
        %v2257 = vld [vmem:[%s2216 + $0x140] sm:$0xff]
        %v2258 = vld [vmem:[%s2216 + $0x148] sm:$0xff]
        %v2259 = vld [vmem:[%s2216 + $0x150] sm:$0xff]
        %v2260 = vld [vmem:[%s2216 + $0x158] sm:$0xff]
        %v2261 = vld [vmem:[%s2216 + $0x160] sm:$0xff]
        %v2262 = vld [vmem:[%s2216 + $0x168] sm:$0xff]
        %v2263 = vld [vmem:[%s2216 + $0x170] sm:$0xff]
        %v2264 = vld [vmem:[%s2216 + $0x178] sm:$0xff]
        %v2265 = vlaneseq
        %v2266 = vshrl.u32 %v2265, 7
        %v2267 = vsub.s32 5, %v2266
        %v2268 = vrot.slane %v350, %v2267
        %v2269 = vlaneseq
        %v2270 = vshrl.u32 %v2269, 7
        %v2271 = vsub.s32 5, %v2270
        %v2272 = vrot.slane %v351, %v2271
        %v2321 = vunpack.c.l.b16 %v2217
        %v2322 = vunpack.c.h.b16 %v2217
        %v2323 = vunpack.c.l.b16 %v2218
        %v2324 = vunpack.c.h.b16 %v2218
        %v2325 = vunpack.c.l.b16 %v2219
        %v2326 = vunpack.c.h.b16 %v2219
        %v2327 = vunpack.c.l.b16 %v2220
        %v2328 = vunpack.c.h.b16 %v2220
        %v2329 = vunpack.c.l.b16 %v2221
        %v2330 = vunpack.c.h.b16 %v2221
        %v2331 = vunpack.c.l.b16 %v2222
        %v2332 = vunpack.c.h.b16 %v2222
        %v2333 = vunpack.c.l.b16 %v2223
        %v2334 = vunpack.c.h.b16 %v2223
        %v2335 = vunpack.c.l.b16 %v2224
        %v2336 = vunpack.c.h.b16 %v2224
        %v2337 = vunpack.c.l.b16 %v2225
        %v2338 = vunpack.c.h.b16 %v2225
        %v2339 = vunpack.c.l.b16 %v2226
        %v2340 = vunpack.c.h.b16 %v2226
        %v2341 = vunpack.c.l.b16 %v2227
        %v2342 = vunpack.c.h.b16 %v2227
        %v2343 = vunpack.c.l.b16 %v2228
        %v2344 = vunpack.c.h.b16 %v2228
        %v2345 = vunpack.c.l.b16 %v2229
        %v2346 = vunpack.c.h.b16 %v2229
        %v2347 = vunpack.c.l.b16 %v2230
        %v2348 = vunpack.c.h.b16 %v2230
        %v2349 = vunpack.c.l.b16 %v2231
        %v2350 = vunpack.c.h.b16 %v2231
        %v2351 = vunpack.c.l.b16 %v2232
        %v2352 = vunpack.c.h.b16 %v2232
        %v2353 = vunpack.c.l.b16 %v2233
        %v2354 = vunpack.c.h.b16 %v2233
        %v2355 = vunpack.c.l.b16 %v2234
        %v2356 = vunpack.c.h.b16 %v2234
        %v2357 = vunpack.c.l.b16 %v2235
        %v2358 = vunpack.c.h.b16 %v2235
        %v2359 = vunpack.c.l.b16 %v2236
        %v2360 = vunpack.c.h.b16 %v2236
        %v2361 = vunpack.c.l.b16 %v2237
        %v2362 = vunpack.c.h.b16 %v2237
        %v2363 = vunpack.c.l.b16 %v2238
        %v2364 = vunpack.c.h.b16 %v2238
        %v2365 = vunpack.c.l.b16 %v2239
        %v2366 = vunpack.c.h.b16 %v2239
        %v2367 = vunpack.c.l.b16 %v2240
        %v2368 = vunpack.c.h.b16 %v2240
        %v2369 = vunpack.c.l.b16 %v2241
        %v2370 = vunpack.c.h.b16 %v2241
        %v2371 = vunpack.c.l.b16 %v2242
        %v2372 = vunpack.c.h.b16 %v2242
        %v2373 = vunpack.c.l.b16 %v2243
        %v2374 = vunpack.c.h.b16 %v2243
        %v2375 = vunpack.c.l.b16 %v2244
        %v2376 = vunpack.c.h.b16 %v2244
        %v2377 = vunpack.c.l.b16 %v2245
        %v2378 = vunpack.c.h.b16 %v2245
        %v2379 = vunpack.c.l.b16 %v2246
        %v2380 = vunpack.c.h.b16 %v2246
        %v2381 = vunpack.c.l.b16 %v2247
        %v2382 = vunpack.c.h.b16 %v2247
        %v2383 = vunpack.c.l.b16 %v2248
        %v2384 = vunpack.c.h.b16 %v2248
        %v2385 = vunpack.c.l.b16 %v2249
        %v2386 = vunpack.c.h.b16 %v2249
        %v2387 = vunpack.c.l.b16 %v2250
        %v2388 = vunpack.c.h.b16 %v2250
        %v2389 = vunpack.c.l.b16 %v2251
        %v2390 = vunpack.c.h.b16 %v2251
        %v2391 = vunpack.c.l.b16 %v2252
        %v2392 = vunpack.c.h.b16 %v2252
        %v2393 = vunpack.c.l.b16 %v2253
        %v2394 = vunpack.c.h.b16 %v2253
        %v2395 = vunpack.c.l.b16 %v2254
        %v2396 = vunpack.c.h.b16 %v2254
        %v2397 = vunpack.c.l.b16 %v2255
        %v2398 = vunpack.c.h.b16 %v2255
        %v2399 = vunpack.c.l.b16 %v2256
        %v2400 = vunpack.c.h.b16 %v2256
        %v2401 = vunpack.c.l.b16 %v2257
        %v2402 = vunpack.c.h.b16 %v2257
        %v2403 = vunpack.c.l.b16 %v2258
        %v2404 = vunpack.c.h.b16 %v2258
        %v2405 = vunpack.c.l.b16 %v2259
        %v2406 = vunpack.c.h.b16 %v2259
        %v2407 = vunpack.c.l.b16 %v2260
        %v2408 = vunpack.c.h.b16 %v2260
        %v2409 = vunpack.c.l.b16 %v2261
        %v2410 = vunpack.c.h.b16 %v2261
        %v2411 = vunpack.c.l.b16 %v2262
        %v2412 = vunpack.c.h.b16 %v2262
        %v2413 = vunpack.c.l.b16 %v2263
        %v2414 = vunpack.c.h.b16 %v2263
        %v2415 = vunpack.c.l.b16 %v2264
        %v2416 = vunpack.c.h.b16 %v2264
        %v2417 = vpack.c.b16 %v2323, %v2321
        %v2418 = vpack.c.b16 %v2324, %v2322
        %v2419 = vpack.c.b16 %v2327, %v2325
        %v2420 = vpack.c.b16 %v2328, %v2326
        %v2421 = vpack.c.b16 %v2331, %v2329
        %v2422 = vpack.c.b16 %v2332, %v2330
        %v2423 = vpack.c.b16 %v2335, %v2333
        %v2424 = vpack.c.b16 %v2336, %v2334
        %v2425 = vpack.c.b16 %v2339, %v2337
        %v2426 = vpack.c.b16 %v2340, %v2338
        %v2427 = vpack.c.b16 %v2343, %v2341
        %v2428 = vpack.c.b16 %v2344, %v2342
        %v2429 = vpack.c.b16 %v2347, %v2345
        %v2430 = vpack.c.b16 %v2348, %v2346
        %v2431 = vpack.c.b16 %v2351, %v2349
        %v2432 = vpack.c.b16 %v2352, %v2350
        %v2433 = vpack.c.b16 %v2355, %v2353
        %v2434 = vpack.c.b16 %v2356, %v2354
        %v2435 = vpack.c.b16 %v2359, %v2357
        %v2436 = vpack.c.b16 %v2360, %v2358
        %v2437 = vpack.c.b16 %v2363, %v2361
        %v2438 = vpack.c.b16 %v2364, %v2362
        %v2439 = vpack.c.b16 %v2367, %v2365
        %v2440 = vpack.c.b16 %v2368, %v2366
        %v2441 = vpack.c.b16 %v2371, %v2369
        %v2442 = vpack.c.b16 %v2372, %v2370
        %v2443 = vpack.c.b16 %v2375, %v2373
        %v2444 = vpack.c.b16 %v2376, %v2374
        %v2445 = vpack.c.b16 %v2379, %v2377
        %v2446 = vpack.c.b16 %v2380, %v2378
        %v2447 = vpack.c.b16 %v2383, %v2381
        %v2448 = vpack.c.b16 %v2384, %v2382
        %v2449 = vpack.c.b16 %v2387, %v2385
        %v2450 = vpack.c.b16 %v2388, %v2386
        %v2451 = vpack.c.b16 %v2391, %v2389
        %v2452 = vpack.c.b16 %v2392, %v2390
        %v2453 = vpack.c.b16 %v2395, %v2393
        %v2454 = vpack.c.b16 %v2396, %v2394
        %v2455 = vpack.c.b16 %v2399, %v2397
        %v2456 = vpack.c.b16 %v2400, %v2398
        %v2457 = vpack.c.b16 %v2403, %v2401
        %v2458 = vpack.c.b16 %v2404, %v2402
        %v2459 = vpack.c.b16 %v2407, %v2405
        %v2460 = vpack.c.b16 %v2408, %v2406
        %v2461 = vpack.c.b16 %v2411, %v2409
        %v2462 = vpack.c.b16 %v2412, %v2410
        %v2463 = vpack.c.b16 %v2415, %v2413
        %v2464 = vpack.c.b16 %v2416, %v2414
        %2513 = vmatprep.subr.bf16.mxu0 %v2432
        %2514 = vmatpush1.bf16.msra.mxu0 %v2431
        %2515 = vmatprep.subr.bf16.mxu0 %v2430
        %2516 = vmatpush1.bf16.msra.mxu0 %v2429
        %2517 = vmatprep.subr.bf16.mxu0 %v2428
        %2518 = vmatpush1.bf16.msra.mxu0 %v2427
        %2519 = vmatprep.subr.bf16.mxu0 %v2426
        %2520 = vmatpush1.bf16.msra.mxu0 %v2425
        %2521 = vmatprep.subr.bf16.mxu0 %v2424
        %2522 = vmatpush1.bf16.msra.mxu0 %v2423
        %2523 = vmatprep.subr.bf16.mxu0 %v2422
        %2524 = vmatpush1.bf16.msra.mxu0 %v2421
        %2525 = vmatprep.subr.bf16.mxu0 %v2420
        %2526 = vmatpush1.bf16.msra.mxu0 %v2419
        %2527 = vmatprep.subr.bf16.mxu0 %v2418
        %2528 = vmatpush1.bf16.msra.mxu0 %v2417
        %2529 = vmatprep.subr.bf16.mxu0 %v2448
        %2530 = vmatpush2.bf16.msra.mxu0 %v2447
        %2531 = vmatprep.subr.bf16.mxu0 %v2446
        %2532 = vmatpush2.bf16.msra.mxu0 %v2445
        %2533 = vmatprep.subr.bf16.mxu0 %v2444
        %2534 = vmatpush2.bf16.msra.mxu0 %v2443
        %2535 = vmatprep.subr.bf16.mxu0 %v2442
        %2536 = vmatpush2.bf16.msra.mxu0 %v2441
        %2537 = vmatprep.subr.bf16.mxu0 %v2440
        %2538 = vmatpush2.bf16.msra.mxu0 %v2439
        %2539 = vmatprep.subr.bf16.mxu0 %v2438
        %2540 = vmatpush2.bf16.msra.mxu0 %v2437
        %2541 = vmatprep.subr.bf16.mxu0 %v2436
        %2542 = vmatpush2.bf16.msra.mxu0 %v2435
        %2543 = vmatprep.subr.bf16.mxu0 %v2434
        %2544 = vmatpush2.bf16.msra.mxu0 %v2433
        %2545 = vmatprep.mubr.bf16.mxu0 %v2214
        %2546 = vmatmul.mubr.bf16.gmra.mxu0 %v2213
        %v2547 = vpop.f32.mrf.mxu0
        %v2548 = vadd.f32 %v2268, %v2547
        %v2549 = vpop.f32.mrf.mxu0
        %v2550 = vadd.f32 %v2272, %v2549
        %v2551 = vpop.f32.mrf.mxu0
        %v2552 = vpop.f32.mrf.mxu0
        %2553 = vdwg.mxu0
        %2554 = vmatprep.subr.bf16.mxu0 %v2464
        %2555 = vmatpush1.bf16.msra.mxu0 %v2463
        %2556 = vmatprep.subr.bf16.mxu0 %v2462
        %2557 = vmatpush1.bf16.msra.mxu0 %v2461
        %2558 = vmatprep.subr.bf16.mxu0 %v2460
        %2559 = vmatpush1.bf16.msra.mxu0 %v2459
        %2560 = vmatprep.subr.bf16.mxu0 %v2458
        %2561 = vmatpush1.bf16.msra.mxu0 %v2457
        %2562 = vmatprep.subr.bf16.mxu0 %v2456
        %2563 = vmatpush1.bf16.msra.mxu0 %v2455
        %2564 = vmatprep.subr.bf16.mxu0 %v2454
        %2565 = vmatpush1.bf16.msra.mxu0 %v2453
        %2566 = vmatprep.subr.bf16.mxu0 %v2452
        %2567 = vmatpush1.bf16.msra.mxu0 %v2451
        %2568 = vmatprep.subr.bf16.mxu0 %v2450
        %2569 = vmatpush1.bf16.msra.mxu0 %v2449
        %2570 = vmatprep.subr.bf16.mxu0 0
        %2571 = vmatpush2.bf16.msra.mxu0 0
        %2572 = vmatprep.subr.bf16.mxu0 0
        %2573 = vmatpush2.bf16.msra.mxu0 0
        %2574 = vmatprep.subr.bf16.mxu0 0
        %2575 = vmatpush2.bf16.msra.mxu0 0
        %2576 = vmatprep.subr.bf16.mxu0 0
        %2577 = vmatpush2.bf16.msra.mxu0 0
        %2578 = vmatprep.subr.bf16.mxu0 0
        %2579 = vmatpush2.bf16.msra.mxu0 0
        %2580 = vmatprep.subr.bf16.mxu0 0
        %2581 = vmatpush2.bf16.msra.mxu0 0
        %2582 = vmatprep.subr.bf16.mxu0 0
        %2583 = vmatpush2.bf16.msra.mxu0 0
        %2584 = vmatprep.subr.bf16.mxu0 0
        %2585 = vmatpush2.bf16.msra.mxu0 0
        %2586 = vmatprep.mubr.bf16.mxu0 0
        %2587 = vmatmul.mubr.bf16.gmra.mxu0 %v2215
        %v2588 = vpop.f32.mrf.mxu0
        %v2589 = vadd.f32 %v2548, %v2588
        %v2590 = vpop.f32.mrf.mxu0
        %v2591 = vadd.f32 %v2550, %v2590
        %v2592 = vpop.f32.mrf.mxu0
        %v2593 = vpop.f32.mrf.mxu0
        %2594 = vdwg.mxu0
        %v2595 = vmax.f32 %v2589, 0.0
        %v2596 = vmax.f32 %v2591, 0.0
        %v2597 = vpack.c.bf16 %v2595, %v2595
        %v2598 = vpack.c.bf16 %v2596, %v2596
        %s2599 = scalar_lea.vmem [#allocation4], 768
        %v2600 = vld [vmem:[%s2599] sm:$0xff]
        %v2601 = vld [vmem:[%s2599 + $0x8] sm:$0xf]
        %v2602 = vld [vmem:[%s2599 + $0xc] sm:$0xff]
        %v2603 = vld [vmem:[%s2599 + $0x14] sm:$0xf]
        %v2604 = vld [vmem:[%s2599 + $0x18] sm:$0xff]
        %v2605 = vld [vmem:[%s2599 + $0x20] sm:$0xf]
        %v2606 = vld [vmem:[%s2599 + $0x24] sm:$0xff]
        %v2607 = vld [vmem:[%s2599 + $0x2c] sm:$0xf]
        %v2608 = vld [vmem:[%s2599 + $0x30] sm:$0xff]
        %v2609 = vld [vmem:[%s2599 + $0x38] sm:$0xf]
        %v2610 = vld [vmem:[%s2599 + $0x3c] sm:$0xff]
        %v2611 = vld [vmem:[%s2599 + $0x44] sm:$0xf]
        %v2612 = vld [vmem:[%s2599 + $0x48] sm:$0xff]
        %v2613 = vld [vmem:[%s2599 + $0x50] sm:$0xf]
        %v2614 = vld [vmem:[%s2599 + $0x54] sm:$0xff]
        %v2615 = vld [vmem:[%s2599 + $0x5c] sm:$0xf]
        %v2616 = vld [vmem:[%s2599 + $0x60] sm:$0xff]
        %v2617 = vld [vmem:[%s2599 + $0x68] sm:$0xf]
        %v2618 = vld [vmem:[%s2599 + $0x6c] sm:$0xff]
        %v2619 = vld [vmem:[%s2599 + $0x74] sm:$0xf]
        %v2620 = vld [vmem:[%s2599 + $0x78] sm:$0xff]
        %v2621 = vld [vmem:[%s2599 + $0x80] sm:$0xf]
        %v2622 = vld [vmem:[%s2599 + $0x84] sm:$0xff]
        %v2623 = vld [vmem:[%s2599 + $0x8c] sm:$0xf]
        %v2624 = vld [vmem:[%s2599 + $0x90] sm:$0xff]
        %v2625 = vld [vmem:[%s2599 + $0x98] sm:$0xf]
        %v2626 = vld [vmem:[%s2599 + $0x9c] sm:$0xff]
        %v2627 = vld [vmem:[%s2599 + $0xa4] sm:$0xf]
        %v2628 = vld [vmem:[%s2599 + $0xa8] sm:$0xff]
        %v2629 = vld [vmem:[%s2599 + $0xb0] sm:$0xf]
        %v2630 = vld [vmem:[%s2599 + $0xb4] sm:$0xff]
        %v2631 = vld [vmem:[%s2599 + $0xbc] sm:$0xf]
        %v2632 = vld [vmem:[%s2599 + $0xc0] sm:$0xff]
        %v2633 = vld [vmem:[%s2599 + $0xc8] sm:$0xf]
        %v2634 = vld [vmem:[%s2599 + $0xcc] sm:$0xff]
        %v2635 = vld [vmem:[%s2599 + $0xd4] sm:$0xf]
        %v2636 = vld [vmem:[%s2599 + $0xd8] sm:$0xff]
        %v2637 = vld [vmem:[%s2599 + $0xe0] sm:$0xf]
        %v2638 = vld [vmem:[%s2599 + $0xe4] sm:$0xff]
        %v2639 = vld [vmem:[%s2599 + $0xec] sm:$0xf]
        %v2640 = vld [vmem:[%s2599 + $0xf0] sm:$0xff]
        %v2641 = vld [vmem:[%s2599 + $0xf8] sm:$0xf]
        %v2642 = vld [vmem:[%s2599 + $0xfc] sm:$0xff]
        %v2643 = vld [vmem:[%s2599 + $0x104] sm:$0xf]
        %v2644 = vld [vmem:[%s2599 + $0x108] sm:$0xff]
        %v2645 = vld [vmem:[%s2599 + $0x110] sm:$0xf]
        %v2646 = vld [vmem:[%s2599 + $0x114] sm:$0xff]
        %v2647 = vld [vmem:[%s2599 + $0x11c] sm:$0xf]
        %v2648 = vld [vmem:[%s2599 + $0x120] sm:$0xff]
        %v2649 = vld [vmem:[%s2599 + $0x128] sm:$0xf]
        %v2650 = vld [vmem:[%s2599 + $0x12c] sm:$0xff]
        %v2651 = vld [vmem:[%s2599 + $0x134] sm:$0xf]
        %v2652 = vld [vmem:[%s2599 + $0x138] sm:$0xff]
        %v2653 = vld [vmem:[%s2599 + $0x140] sm:$0xf]
        %v2654 = vld [vmem:[%s2599 + $0x144] sm:$0xff]
        %v2655 = vld [vmem:[%s2599 + $0x14c] sm:$0xf]
        %v2656 = vld [vmem:[%s2599 + $0x150] sm:$0xff]
        %v2657 = vld [vmem:[%s2599 + $0x158] sm:$0xf]
        %v2658 = vld [vmem:[%s2599 + $0x15c] sm:$0xff]
        %v2659 = vld [vmem:[%s2599 + $0x164] sm:$0xf]
        %v2660 = vld [vmem:[%s2599 + $0x168] sm:$0xff]
        %v2661 = vld [vmem:[%s2599 + $0x170] sm:$0xf]
        %v2662 = vld [vmem:[%s2599 + $0x174] sm:$0xff]
        %v2663 = vld [vmem:[%s2599 + $0x17c] sm:$0xf]
        %v2664 = vlaneseq
        %v2665 = vshrl.u32 %v2664, 7
        %v2666 = vsub.s32 6, %v2665
        %v2667 = vrot.slane %v350, %v2666
        %v2668 = vlaneseq
        %v2669 = vshrl.u32 %v2668, 7
        %v2670 = vsub.s32 6, %v2669
        %v2671 = vrot.slane %v351, %v2670
        %v2672 = vlaneseq
        %v2673 = vshrl.u32 %v2672, 7
        %v2674 = vsub.s32 6, %v2673
        %v2675 = vrot.slane %v352, %v2674
        %v2740 = vunpack.c.l.b16 %v2600
        %v2741 = vunpack.c.h.b16 %v2600
        %v2742 = vunpack.c.l.b16 %v2601
        %v2743 = vunpack.c.l.b16 %v2602
        %v2744 = vunpack.c.h.b16 %v2602
        %v2745 = vunpack.c.l.b16 %v2603
        %v2746 = vunpack.c.l.b16 %v2604
        %v2747 = vunpack.c.h.b16 %v2604
        %v2748 = vunpack.c.l.b16 %v2605
        %v2749 = vunpack.c.l.b16 %v2606
        %v2750 = vunpack.c.h.b16 %v2606
        %v2751 = vunpack.c.l.b16 %v2607
        %v2752 = vunpack.c.l.b16 %v2608
        %v2753 = vunpack.c.h.b16 %v2608
        %v2754 = vunpack.c.l.b16 %v2609
        %v2755 = vunpack.c.l.b16 %v2610
        %v2756 = vunpack.c.h.b16 %v2610
        %v2757 = vunpack.c.l.b16 %v2611
        %v2758 = vunpack.c.l.b16 %v2612
        %v2759 = vunpack.c.h.b16 %v2612
        %v2760 = vunpack.c.l.b16 %v2613
        %v2761 = vunpack.c.l.b16 %v2614
        %v2762 = vunpack.c.h.b16 %v2614
        %v2763 = vunpack.c.l.b16 %v2615
        %v2764 = vunpack.c.l.b16 %v2616
        %v2765 = vunpack.c.h.b16 %v2616
        %v2766 = vunpack.c.l.b16 %v2617
        %v2767 = vunpack.c.l.b16 %v2618
        %v2768 = vunpack.c.h.b16 %v2618
        %v2769 = vunpack.c.l.b16 %v2619
        %v2770 = vunpack.c.l.b16 %v2620
        %v2771 = vunpack.c.h.b16 %v2620
        %v2772 = vunpack.c.l.b16 %v2621
        %v2773 = vunpack.c.l.b16 %v2622
        %v2774 = vunpack.c.h.b16 %v2622
        %v2775 = vunpack.c.l.b16 %v2623
        %v2776 = vunpack.c.l.b16 %v2624
        %v2777 = vunpack.c.h.b16 %v2624
        %v2778 = vunpack.c.l.b16 %v2625
        %v2779 = vunpack.c.l.b16 %v2626
        %v2780 = vunpack.c.h.b16 %v2626
        %v2781 = vunpack.c.l.b16 %v2627
        %v2782 = vunpack.c.l.b16 %v2628
        %v2783 = vunpack.c.h.b16 %v2628
        %v2784 = vunpack.c.l.b16 %v2629
        %v2785 = vunpack.c.l.b16 %v2630
        %v2786 = vunpack.c.h.b16 %v2630
        %v2787 = vunpack.c.l.b16 %v2631
        %v2788 = vunpack.c.l.b16 %v2632
        %v2789 = vunpack.c.h.b16 %v2632
        %v2790 = vunpack.c.l.b16 %v2633
        %v2791 = vunpack.c.l.b16 %v2634
        %v2792 = vunpack.c.h.b16 %v2634
        %v2793 = vunpack.c.l.b16 %v2635
        %v2794 = vunpack.c.l.b16 %v2636
        %v2795 = vunpack.c.h.b16 %v2636
        %v2796 = vunpack.c.l.b16 %v2637
        %v2797 = vunpack.c.l.b16 %v2638
        %v2798 = vunpack.c.h.b16 %v2638
        %v2799 = vunpack.c.l.b16 %v2639
        %v2800 = vunpack.c.l.b16 %v2640
        %v2801 = vunpack.c.h.b16 %v2640
        %v2802 = vunpack.c.l.b16 %v2641
        %v2803 = vunpack.c.l.b16 %v2642
        %v2804 = vunpack.c.h.b16 %v2642
        %v2805 = vunpack.c.l.b16 %v2643
        %v2806 = vunpack.c.l.b16 %v2644
        %v2807 = vunpack.c.h.b16 %v2644
        %v2808 = vunpack.c.l.b16 %v2645
        %v2809 = vunpack.c.l.b16 %v2646
        %v2810 = vunpack.c.h.b16 %v2646
        %v2811 = vunpack.c.l.b16 %v2647
        %v2812 = vunpack.c.l.b16 %v2648
        %v2813 = vunpack.c.h.b16 %v2648
        %v2814 = vunpack.c.l.b16 %v2649
        %v2815 = vunpack.c.l.b16 %v2650
        %v2816 = vunpack.c.h.b16 %v2650
        %v2817 = vunpack.c.l.b16 %v2651
        %v2818 = vunpack.c.l.b16 %v2652
        %v2819 = vunpack.c.h.b16 %v2652
        %v2820 = vunpack.c.l.b16 %v2653
        %v2821 = vunpack.c.l.b16 %v2654
        %v2822 = vunpack.c.h.b16 %v2654
        %v2823 = vunpack.c.l.b16 %v2655
        %v2824 = vunpack.c.l.b16 %v2656
        %v2825 = vunpack.c.h.b16 %v2656
        %v2826 = vunpack.c.l.b16 %v2657
        %v2827 = vunpack.c.l.b16 %v2658
        %v2828 = vunpack.c.h.b16 %v2658
        %v2829 = vunpack.c.l.b16 %v2659
        %v2830 = vunpack.c.l.b16 %v2660
        %v2831 = vunpack.c.h.b16 %v2660
        %v2832 = vunpack.c.l.b16 %v2661
        %v2833 = vunpack.c.l.b16 %v2662
        %v2834 = vunpack.c.h.b16 %v2662
        %v2835 = vunpack.c.l.b16 %v2663
        %v2836 = vpack.c.b16 %v2743, %v2740
        %v2837 = vpack.c.b16 %v2744, %v2741
        %v2838 = vpack.c.b16 %v2745, %v2742
        %v2839 = vpack.c.b16 %v2749, %v2746
        %v2840 = vpack.c.b16 %v2750, %v2747
        %v2841 = vpack.c.b16 %v2751, %v2748
        %v2842 = vpack.c.b16 %v2755, %v2752
        %v2843 = vpack.c.b16 %v2756, %v2753
        %v2844 = vpack.c.b16 %v2757, %v2754
        %v2845 = vpack.c.b16 %v2761, %v2758
        %v2846 = vpack.c.b16 %v2762, %v2759
        %v2847 = vpack.c.b16 %v2763, %v2760
        %v2848 = vpack.c.b16 %v2767, %v2764
        %v2849 = vpack.c.b16 %v2768, %v2765
        %v2850 = vpack.c.b16 %v2769, %v2766
        %v2851 = vpack.c.b16 %v2773, %v2770
        %v2852 = vpack.c.b16 %v2774, %v2771
        %v2853 = vpack.c.b16 %v2775, %v2772
        %v2854 = vpack.c.b16 %v2779, %v2776
        %v2855 = vpack.c.b16 %v2780, %v2777
        %v2856 = vpack.c.b16 %v2781, %v2778
        %v2857 = vpack.c.b16 %v2785, %v2782
        %v2858 = vpack.c.b16 %v2786, %v2783
        %v2859 = vpack.c.b16 %v2787, %v2784
        %v2860 = vpack.c.b16 %v2791, %v2788
        %v2861 = vpack.c.b16 %v2792, %v2789
        %v2862 = vpack.c.b16 %v2793, %v2790
        %v2863 = vpack.c.b16 %v2797, %v2794
        %v2864 = vpack.c.b16 %v2798, %v2795
        %v2865 = vpack.c.b16 %v2799, %v2796
        %v2866 = vpack.c.b16 %v2803, %v2800
        %v2867 = vpack.c.b16 %v2804, %v2801
        %v2868 = vpack.c.b16 %v2805, %v2802
        %v2869 = vpack.c.b16 %v2809, %v2806
        %v2870 = vpack.c.b16 %v2810, %v2807
        %v2871 = vpack.c.b16 %v2811, %v2808
        %v2872 = vpack.c.b16 %v2815, %v2812
        %v2873 = vpack.c.b16 %v2816, %v2813
        %v2874 = vpack.c.b16 %v2817, %v2814
        %v2875 = vpack.c.b16 %v2821, %v2818
        %v2876 = vpack.c.b16 %v2822, %v2819
        %v2877 = vpack.c.b16 %v2823, %v2820
        %v2878 = vpack.c.b16 %v2827, %v2824
        %v2879 = vpack.c.b16 %v2828, %v2825
        %v2880 = vpack.c.b16 %v2829, %v2826
        %v2881 = vpack.c.b16 %v2833, %v2830
        %v2882 = vpack.c.b16 %v2834, %v2831
        %v2883 = vpack.c.b16 %v2835, %v2832
        %2932 = vmatprep.subr.bf16.mxu0 %v2858
        %2933 = vmatpush1.bf16.msra.mxu0 %v2857
        %2934 = vmatprep.subr.bf16.mxu0 %v2855
        %2935 = vmatpush1.bf16.msra.mxu0 %v2854
        %2936 = vmatprep.subr.bf16.mxu0 %v2852
        %2937 = vmatpush1.bf16.msra.mxu0 %v2851
        %2938 = vmatprep.subr.bf16.mxu0 %v2849
        %2939 = vmatpush1.bf16.msra.mxu0 %v2848
        %2940 = vmatprep.subr.bf16.mxu0 %v2846
        %2941 = vmatpush1.bf16.msra.mxu0 %v2845
        %2942 = vmatprep.subr.bf16.mxu0 %v2843
        %2943 = vmatpush1.bf16.msra.mxu0 %v2842
        %2944 = vmatprep.subr.bf16.mxu0 %v2840
        %2945 = vmatpush1.bf16.msra.mxu0 %v2839
        %2946 = vmatprep.subr.bf16.mxu0 %v2837
        %2947 = vmatpush1.bf16.msra.mxu0 %v2836
        %2948 = vmatprep.subr.bf16.mxu0 %v2882
        %2949 = vmatpush2.bf16.msra.mxu0 %v2881
        %2950 = vmatprep.subr.bf16.mxu0 %v2879
        %2951 = vmatpush2.bf16.msra.mxu0 %v2878
        %2952 = vmatprep.subr.bf16.mxu0 %v2876
        %2953 = vmatpush2.bf16.msra.mxu0 %v2875
        %2954 = vmatprep.subr.bf16.mxu0 %v2873
        %2955 = vmatpush2.bf16.msra.mxu0 %v2872
        %2956 = vmatprep.subr.bf16.mxu0 %v2870
        %2957 = vmatpush2.bf16.msra.mxu0 %v2869
        %2958 = vmatprep.subr.bf16.mxu0 %v2867
        %2959 = vmatpush2.bf16.msra.mxu0 %v2866
        %2960 = vmatprep.subr.bf16.mxu0 %v2864
        %2961 = vmatpush2.bf16.msra.mxu0 %v2863
        %2962 = vmatprep.subr.bf16.mxu0 %v2861
        %2963 = vmatpush2.bf16.msra.mxu0 %v2860
        %2964 = vmatprep.mubr.bf16.mxu0 %v2598
        %2965 = vmatmul.mubr.bf16.gmra.mxu0 %v2597
        %v2966 = vpop.f32.mrf.mxu0
        %v2967 = vadd.f32 %v2667, %v2966
        %v2968 = vpop.f32.mrf.mxu0
        %v2969 = vadd.f32 %v2671, %v2968
        %v2970 = vpop.f32.mrf.mxu0
        %v2971 = vpop.f32.mrf.mxu0
        %2972 = vdwg.mxu0
        %2973 = vmatprep.subr.bf16.mxu0 0
        %2974 = vmatpush1.bf16.msra.mxu0 %v2859
        %2975 = vmatprep.subr.bf16.mxu0 0
        %2976 = vmatpush1.bf16.msra.mxu0 %v2856
        %2977 = vmatprep.subr.bf16.mxu0 0
        %2978 = vmatpush1.bf16.msra.mxu0 %v2853
        %2979 = vmatprep.subr.bf16.mxu0 0
        %2980 = vmatpush1.bf16.msra.mxu0 %v2850
        %2981 = vmatprep.subr.bf16.mxu0 0
        %2982 = vmatpush1.bf16.msra.mxu0 %v2847
        %2983 = vmatprep.subr.bf16.mxu0 0
        %2984 = vmatpush1.bf16.msra.mxu0 %v2844
        %2985 = vmatprep.subr.bf16.mxu0 0
        %2986 = vmatpush1.bf16.msra.mxu0 %v2841
        %2987 = vmatprep.subr.bf16.mxu0 0
        %2988 = vmatpush1.bf16.msra.mxu0 %v2838
        %2989 = vmatprep.subr.bf16.mxu0 0
        %2990 = vmatpush2.bf16.msra.mxu0 %v2883
        %2991 = vmatprep.subr.bf16.mxu0 0
        %2992 = vmatpush2.bf16.msra.mxu0 %v2880
        %2993 = vmatprep.subr.bf16.mxu0 0
        %2994 = vmatpush2.bf16.msra.mxu0 %v2877
        %2995 = vmatprep.subr.bf16.mxu0 0
        %2996 = vmatpush2.bf16.msra.mxu0 %v2874
        %2997 = vmatprep.subr.bf16.mxu0 0
        %2998 = vmatpush2.bf16.msra.mxu0 %v2871
        %2999 = vmatprep.subr.bf16.mxu0 0
        %3000 = vmatpush2.bf16.msra.mxu0 %v2868
        %3001 = vmatprep.subr.bf16.mxu0 0
        %3002 = vmatpush2.bf16.msra.mxu0 %v2865
        %3003 = vmatprep.subr.bf16.mxu0 0
        %3004 = vmatpush2.bf16.msra.mxu0 %v2862
        %3005 = vmatprep.mubr.bf16.mxu0 %v2598
        %3006 = vmatmul.mubr.bf16.gmra.mxu0 %v2597
        %v3007 = vpop.f32.mrf.mxu0
        %v3008 = vadd.f32 %v2675, %v3007
        %v3009 = vpop.f32.mrf.mxu0
        %v3010 = vpop.f32.mrf.mxu0
        %v3011 = vpop.f32.mrf.mxu0
        %3012 = vdwg.mxu0
        %v3013 = vmax.f32 %v2967, 0.0
        %v3014 = vmax.f32 %v2969, 0.0
        %v3015 = vmax.f32 %v3008, 0.0
        %v3016 = vpack.c.bf16 %v3013, %v3013
        %v3017 = vpack.c.bf16 %v3014, %v3014
        %v3018 = vpack.c.bf16 %v3015, %v3015
        %v3019 = vld [vmem:[%s5] sm:$0xf]
        %v3020 = vld [vmem:[%s5 + $0x4] sm:$0xf]
        %v3021 = vld [vmem:[%s5 + $0x8] sm:$0xf]
        %v3022 = vld [vmem:[%s5 + $0xc] sm:$0xf]
        %v3023 = vld [vmem:[%s5 + $0x10] sm:$0xf]
        %v3024 = vld [vmem:[%s5 + $0x14] sm:$0xf]
        %v3025 = vld [vmem:[%s5 + $0x18] sm:$0xf]
        %v3026 = vld [vmem:[%s5 + $0x1c] sm:$0xf]
        %v3027 = vld [vmem:[%s5 + $0x20] sm:$0xf]
        %v3028 = vld [vmem:[%s5 + $0x24] sm:$0xf]
        %v3029 = vld [vmem:[%s5 + $0x28] sm:$0xf]
        %v3030 = vld [vmem:[%s5 + $0x2c] sm:$0xf]
        %v3031 = vld [vmem:[%s5 + $0x30] sm:$0xf]
        %v3032 = vld [vmem:[%s5 + $0x34] sm:$0xf]
        %v3033 = vld [vmem:[%s5 + $0x38] sm:$0xf]
        %v3034 = vld [vmem:[%s5 + $0x3c] sm:$0xf]
        %v3035 = vld [vmem:[%s5 + $0x40] sm:$0xf]
        %v3036 = vld [vmem:[%s5 + $0x44] sm:$0xf]
        %v3037 = vld [vmem:[%s5 + $0x48] sm:$0xf]
        %v3038 = vld [vmem:[%s5 + $0x4c] sm:$0xf]
        %v3039 = vld [vmem:[%s5 + $0x50] sm:$0xf]
        %v3040 = vld [vmem:[%s5 + $0x54] sm:$0xf]
        %v3041 = vld [vmem:[%s5 + $0x58] sm:$0xf]
        %v3042 = vld [vmem:[%s5 + $0x5c] sm:$0xf]
        %v3043 = vld [vmem:[%s5 + $0x60] sm:$0xf]
        %v3044 = vld [vmem:[%s5 + $0x64] sm:$0xf]
        %v3045 = vld [vmem:[%s5 + $0x68] sm:$0xf]
        %v3046 = vld [vmem:[%s5 + $0x6c] sm:$0xf]
        %v3047 = vld [vmem:[%s5 + $0x70] sm:$0xf]
        %v3048 = vld [vmem:[%s5 + $0x74] sm:$0xf]
        %v3049 = vld [vmem:[%s5 + $0x78] sm:$0xf]
        %v3050 = vld [vmem:[%s5 + $0x7c] sm:$0xf]
        %v3051 = vld [vmem:[%s5 + $0x80] sm:$0xf]
        %v3052 = vld [vmem:[%s5 + $0x84] sm:$0xf]
        %v3053 = vld [vmem:[%s5 + $0x88] sm:$0xf]
        %v3054 = vld [vmem:[%s5 + $0x8c] sm:$0xf]
        %v3055 = vld [vmem:[%s5 + $0x90] sm:$0xf]
        %v3056 = vld [vmem:[%s5 + $0x94] sm:$0xf]
        %v3057 = vld [vmem:[%s5 + $0x98] sm:$0xf]
        %v3058 = vld [vmem:[%s5 + $0x9c] sm:$0xf]
        %v3059 = vld [vmem:[%s5 + $0xa0] sm:$0xf]
        %v3060 = vld [vmem:[%s5 + $0xa4] sm:$0xf]
        %v3061 = vld [vmem:[%s5 + $0xa8] sm:$0xf]
        %v3062 = vld [vmem:[%s5 + $0xac] sm:$0xf]
        %v3063 = vld [vmem:[%s5 + $0xb0] sm:$0xf]
        %v3064 = vld [vmem:[%s5 + $0xb4] sm:$0xf]
        %v3065 = vld [vmem:[%s5 + $0xb8] sm:$0xf]
        %v3066 = vld [vmem:[%s5 + $0xbc] sm:$0xf]
        %v3067 = vlaneseq
        %v3068 = vshrl.u32 %v3067, 7
        %v3069 = vsub.s32 7, %v3068
        %v3070 = vrot.slane %v350, %v3069
        %v3119 = vunpack.c.l.b16 %v3019
        %v3120 = vunpack.c.l.b16 %v3020
        %v3121 = vunpack.c.l.b16 %v3021
        %v3122 = vunpack.c.l.b16 %v3022
        %v3123 = vunpack.c.l.b16 %v3023
        %v3124 = vunpack.c.l.b16 %v3024
        %v3125 = vunpack.c.l.b16 %v3025
        %v3126 = vunpack.c.l.b16 %v3026
        %v3127 = vunpack.c.l.b16 %v3027
        %v3128 = vunpack.c.l.b16 %v3028
        %v3129 = vunpack.c.l.b16 %v3029
        %v3130 = vunpack.c.l.b16 %v3030
        %v3131 = vunpack.c.l.b16 %v3031
        %v3132 = vunpack.c.l.b16 %v3032
        %v3133 = vunpack.c.l.b16 %v3033
        %v3134 = vunpack.c.l.b16 %v3034
        %v3135 = vunpack.c.l.b16 %v3035
        %v3136 = vunpack.c.l.b16 %v3036
        %v3137 = vunpack.c.l.b16 %v3037
        %v3138 = vunpack.c.l.b16 %v3038
        %v3139 = vunpack.c.l.b16 %v3039
        %v3140 = vunpack.c.l.b16 %v3040
        %v3141 = vunpack.c.l.b16 %v3041
        %v3142 = vunpack.c.l.b16 %v3042
        %v3143 = vunpack.c.l.b16 %v3043
        %v3144 = vunpack.c.l.b16 %v3044
        %v3145 = vunpack.c.l.b16 %v3045
        %v3146 = vunpack.c.l.b16 %v3046
        %v3147 = vunpack.c.l.b16 %v3047
        %v3148 = vunpack.c.l.b16 %v3048
        %v3149 = vunpack.c.l.b16 %v3049
        %v3150 = vunpack.c.l.b16 %v3050
        %v3151 = vunpack.c.l.b16 %v3051
        %v3152 = vunpack.c.l.b16 %v3052
        %v3153 = vunpack.c.l.b16 %v3053
        %v3154 = vunpack.c.l.b16 %v3054
        %v3155 = vunpack.c.l.b16 %v3055
        %v3156 = vunpack.c.l.b16 %v3056
        %v3157 = vunpack.c.l.b16 %v3057
        %v3158 = vunpack.c.l.b16 %v3058
        %v3159 = vunpack.c.l.b16 %v3059
        %v3160 = vunpack.c.l.b16 %v3060
        %v3161 = vunpack.c.l.b16 %v3061
        %v3162 = vunpack.c.l.b16 %v3062
        %v3163 = vunpack.c.l.b16 %v3063
        %v3164 = vunpack.c.l.b16 %v3064
        %v3165 = vunpack.c.l.b16 %v3065
        %v3166 = vunpack.c.l.b16 %v3066
        %v3167 = vpack.c.b16 %v3120, %v3119
        %v3168 = vpack.c.b16 %v3122, %v3121
        %v3169 = vpack.c.b16 %v3124, %v3123
        %v3170 = vpack.c.b16 %v3126, %v3125
        %v3171 = vpack.c.b16 %v3128, %v3127
        %v3172 = vpack.c.b16 %v3130, %v3129
        %v3173 = vpack.c.b16 %v3132, %v3131
        %v3174 = vpack.c.b16 %v3134, %v3133
        %v3175 = vpack.c.b16 %v3136, %v3135
        %v3176 = vpack.c.b16 %v3138, %v3137
        %v3177 = vpack.c.b16 %v3140, %v3139
        %v3178 = vpack.c.b16 %v3142, %v3141
        %v3179 = vpack.c.b16 %v3144, %v3143
        %v3180 = vpack.c.b16 %v3146, %v3145
        %v3181 = vpack.c.b16 %v3148, %v3147
        %v3182 = vpack.c.b16 %v3150, %v3149
        %v3183 = vpack.c.b16 %v3152, %v3151
        %v3184 = vpack.c.b16 %v3154, %v3153
        %v3185 = vpack.c.b16 %v3156, %v3155
        %v3186 = vpack.c.b16 %v3158, %v3157
        %v3187 = vpack.c.b16 %v3160, %v3159
        %v3188 = vpack.c.b16 %v3162, %v3161
        %v3189 = vpack.c.b16 %v3164, %v3163
        %v3190 = vpack.c.b16 %v3166, %v3165
        %3215 = vmatprep.subr.bf16.mxu0 0
        %3216 = vmatpush1.bf16.msra.mxu0 %v3174
        %3217 = vmatprep.subr.bf16.mxu0 0
        %3218 = vmatpush1.bf16.msra.mxu0 %v3173
        %3219 = vmatprep.subr.bf16.mxu0 0
        %3220 = vmatpush1.bf16.msra.mxu0 %v3172
        %3221 = vmatprep.subr.bf16.mxu0 0
        %3222 = vmatpush1.bf16.msra.mxu0 %v3171
        %3223 = vmatprep.subr.bf16.mxu0 0
        %3224 = vmatpush1.bf16.msra.mxu0 %v3170
        %3225 = vmatprep.subr.bf16.mxu0 0
        %3226 = vmatpush1.bf16.msra.mxu0 %v3169
        %3227 = vmatprep.subr.bf16.mxu0 0
        %3228 = vmatpush1.bf16.msra.mxu0 %v3168
        %3229 = vmatprep.subr.bf16.mxu0 0
        %3230 = vmatpush1.bf16.msra.mxu0 %v3167
        %3231 = vmatprep.subr.bf16.mxu0 0
        %3232 = vmatpush2.bf16.msra.mxu0 %v3182
        %3233 = vmatprep.subr.bf16.mxu0 0
        %3234 = vmatpush2.bf16.msra.mxu0 %v3181
        %3235 = vmatprep.subr.bf16.mxu0 0
        %3236 = vmatpush2.bf16.msra.mxu0 %v3180
        %3237 = vmatprep.subr.bf16.mxu0 0
        %3238 = vmatpush2.bf16.msra.mxu0 %v3179
        %3239 = vmatprep.subr.bf16.mxu0 0
        %3240 = vmatpush2.bf16.msra.mxu0 %v3178
        %3241 = vmatprep.subr.bf16.mxu0 0
        %3242 = vmatpush2.bf16.msra.mxu0 %v3177
        %3243 = vmatprep.subr.bf16.mxu0 0
        %3244 = vmatpush2.bf16.msra.mxu0 %v3176
        %3245 = vmatprep.subr.bf16.mxu0 0
        %3246 = vmatpush2.bf16.msra.mxu0 %v3175
        %3247 = vmatprep.mubr.bf16.mxu0 %v3017
        %3248 = vmatmul.mubr.bf16.gmra.mxu0 %v3016
        %v3249 = vpop.f32.mrf.mxu0
        %v3250 = vadd.f32 %v3070, %v3249
        %v3251 = vpop.f32.mrf.mxu0
        %v3252 = vpop.f32.mrf.mxu0
        %v3253 = vpop.f32.mrf.mxu0
        %3254 = vdwg.mxu0
        %3255 = vmatprep.subr.bf16.mxu0 0
        %3256 = vmatpush1.bf16.msra.mxu0 %v3190
        %3257 = vmatprep.subr.bf16.mxu0 0
        %3258 = vmatpush1.bf16.msra.mxu0 %v3189
        %3259 = vmatprep.subr.bf16.mxu0 0
        %3260 = vmatpush1.bf16.msra.mxu0 %v3188
        %3261 = vmatprep.subr.bf16.mxu0 0
        %3262 = vmatpush1.bf16.msra.mxu0 %v3187
        %3263 = vmatprep.subr.bf16.mxu0 0
        %3264 = vmatpush1.bf16.msra.mxu0 %v3186
        %3265 = vmatprep.subr.bf16.mxu0 0
        %3266 = vmatpush1.bf16.msra.mxu0 %v3185
        %3267 = vmatprep.subr.bf16.mxu0 0
        %3268 = vmatpush1.bf16.msra.mxu0 %v3184
        %3269 = vmatprep.subr.bf16.mxu0 0
        %3270 = vmatpush1.bf16.msra.mxu0 %v3183
        %3271 = vmatprep.subr.bf16.mxu0 0
        %3272 = vmatpush2.bf16.msra.mxu0 0
        %3273 = vmatprep.subr.bf16.mxu0 0
        %3274 = vmatpush2.bf16.msra.mxu0 0
        %3275 = vmatprep.subr.bf16.mxu0 0
        %3276 = vmatpush2.bf16.msra.mxu0 0
        %3277 = vmatprep.subr.bf16.mxu0 0
        %3278 = vmatpush2.bf16.msra.mxu0 0
        %3279 = vmatprep.subr.bf16.mxu0 0
        %3280 = vmatpush2.bf16.msra.mxu0 0
        %3281 = vmatprep.subr.bf16.mxu0 0
        %3282 = vmatpush2.bf16.msra.mxu0 0
        %3283 = vmatprep.subr.bf16.mxu0 0
        %3284 = vmatpush2.bf16.msra.mxu0 0
        %3285 = vmatprep.subr.bf16.mxu0 0
        %3286 = vmatpush2.bf16.msra.mxu0 0
        %3287 = vmatprep.mubr.bf16.mxu0 0
        %3288 = vmatmul.mubr.bf16.gmra.mxu0 %v3018
        %v3289 = vpop.f32.mrf.mxu0
        %v3290 = vadd.f32 %v3250, %v3289
        %v3291 = vpop.f32.mrf.mxu0
        %v3292 = vpop.f32.mrf.mxu0
        %v3293 = vpop.f32.mrf.mxu0
        %3294 = vdwg.mxu0
        %v3295 = vmul.f32 %v3290, 0.5
        %v3296 = vtanh.pop %v3295
        %v3297 = vadd.f32 %v3296, 1.0
        %v3298 = vmul.f32 %v3297, 0.5
        %vm3299 = vcmask 7168
        %3300 = vst.msk [vmem:[%s340] sm:$0xff] %vm3299, %v3298
        %p3301 = scmp.lt.s32.totalorder %s24, 1
        %s3302 = scalar_select %p3301, %s24, 1
        %p3303 = scmp.lt.s32.totalorder %s25, 0
        %s3304 = scalar_select %p3303, %s25, 0
        %s3305 = sadd.s32 %s3304, %s3302
        %s3306 = smul.addr %s3305, 8
        %s3307 = scalar_lea.vmem %s7, %s3306
        // Predicated region
        $region57: #{siamese_forward.1} parent=47 // pred_check
          %p3308 = pneg %p209
        $region58: #{siamese_forward.1} parent=47 // pred_check_branch
          %3310 = sbr.rel (%p3308) target = $region60
        $region59: #{siamese_forward.1} parent=47 // pred_region
          _
        $region60: #{siamese_forward.1} parent=47 // pred_fallthru
          _
      $region48: #{siamese_forward.1} parent=5 // pred_fallthru
        _
      %p3311 = scmp.le.s32.totalorder 2, %s15
      // Predicated region
      $region61: #{siamese_forward.1} parent=5 // pred_check
        %p3312 = pneg %p3311
      $region62: #{siamese_forward.1} parent=5 // pred_check_branch
        %3314 = sbr.rel (%p3312) target = $region64
      $region63: #{siamese_forward.1} parent=5 // pred_region
        %s3315 = ssub.s32 %s15, 2
        // Predicated region
        $region65: #{siamese_forward.1} parent=63 // pred_check
          %p3316 = pneg %p215
        $region66: #{siamese_forward.1} parent=63 // pred_check_branch
          %3318 = sbr.rel (%p3316) target = $region68
        $region67: #{siamese_forward.1} parent=63 // pred_region
          %p3319 = scmp.lt.s32.totalorder %s26, 1
          %s3320 = scalar_select %p3319, %s26, 1
          %p3321 = scmp.lt.s32.totalorder %s27, 0
          %s3322 = scalar_select %p3321, %s27, 0
          %s3323 = sadd.s32 %s3322, %s3320
          %s3324 = smul.addr %s3323, 8
          %s3325 = scalar_lea.vmem %s7, %s3324
        $region68: #{siamese_forward.1} parent=63 // pred_fallthru
          _
      $region64: #{siamese_forward.1} parent=5 // pred_fallthru
        _
    $region6: #{siamese_forward.1} parent=1 // loop_footer
      %s19 = sadd.s32 1, %s15
    $region7: #{siamese_forward.1} parent=1 // loop_footer_branch
      %14 = sbr.rel target = $region3
    $region8: #{siamese_forward.1} parent=1 // loop_exit
      _
    %3326 = vsyncpa [#allocation3], 1
    %s3327 = scalar_lea.sflag [#allocation3], 1
    %3328 = vsyncpa %s3327, 1
    %3329 = vsyncpa [#allocation5], 1

</llo_original>
